<compile_context>
chip_gen: v7x
topology: tpu7x:2x2x1
jax: 0.10.0
libtpu: 0.0.40
codegen_flags: <defaults>
</compile_context>

<pallas_src>
import jax
import jax.numpy as jnp
from jax.experimental import pallas as pl
from jax.experimental.pallas import tpu as pltpu

BN_EPS = 1e-5


def decoder_kernel(x_ref, lat_ref, w0x_ref, w0z_ref, wh_ref, wout_ref,
                   gb_ref, bout_ref, out_ref):
    # x_ref:    (x_dim, N)   bf16   (transposed + pre-cast in wrapper)
    # lat_ref:  (batch, z_dim) bf16
    # w0x_ref:  (x_dim, h)   bf16
    # w0z_ref:  (z_dim, h)   bf16
    # wh_ref:   (3, h, h)    bf16   (hidden layers 1..3)
    # wout_ref: (2, h)       bf16   (final weight, transposed)
    # gb_ref:   (8, h)       f32    rows = [g0,b0,g1,b1,g2,b2,g3,b3]
    # bout_ref: (2, 1)       f32
    # out_ref:  (2, N)       f32    row 0 = mu, row 1 = sigma
    n = x_ref.shape[1]
    batch = lat_ref.shape[0]
    num_x = n // batch          # wrapper guarantees batch * num_x == n
    hdim = w0x_ref.shape[1]
    inv_n = 1.0 / n

    # Hoisted once; reused by all four BN layers (MXU reduction LHS).
    ones_row = jnp.ones((1, n), jnp.float32)

    def bn_relu(z, layer):
        gamma = gb_ref[2 * layer:2 * layer + 1, :]
        beta = gb_ref[2 * layer + 1:2 * layer + 2, :]
        # Shifted one-pass stats (pivot = first row) against cancellation;
        # both N-reductions run as (1,N)x(N,h) matmuls on the idle MXU
        # instead of cross-sublane VPU/XLU reductions.
        pivot = z[0:1, :]
        d = z - pivot
        s1 = jnp.dot(ones_row, d, preferred_element_type=jnp.float32)
        s2 = jnp.dot(ones_row, d * d, preferred_element_type=jnp.float32)
        mean_d = s1 * inv_n
        var = jnp.maximum(s2 * inv_n - mean_d * mean_d, 0.0)
        z_hat = (d - mean_d) * jax.lax.rsqrt(var + BN_EPS)
        return jnp.maximum(z_hat * gamma + beta, 0.0)

    # Layer 0: fused concat via associativity (no sel matmul, no concat buf).
    zx = jax.lax.dot_general(
        x_ref[...], w0x_ref[...],
        dimension_numbers=(((0,), (0,)), ((), ())),      # contract x_dim
        preferred_element_type=jnp.float32)              # (N, h)
    lz = jnp.dot(lat_ref[...], w0z_ref[...],
                 preferred_element_type=jnp.float32)     # (batch, h)
    z = (zx.reshape(batch, num_x, hdim) + lz[:, None, :]).reshape(n, hdim)
    # Linear bias omitted for layers 0-3: BatchNorm removes the batch mean.
    act = bn_relu(z, 0)

    # Hidden layers 1..3 (stacked bf16 weights, f32 accumulate).
    for layer in range(1, 4):
        z = jnp.dot(act.astype(jnp.bfloat16), wh_ref[layer - 1],
                    preferred_element_type=jnp.float32)
        act = bn_relu(z, layer)

    # Final linear, computed transposed -> (2, N): lane-dense along N.
    out_t = jax.lax.dot_general(
        wout_ref[...], act.astype(jnp.bfloat16),
        dimension_numbers=(((1,), (1,)), ((), ())),
        preferred_element_type=jnp.float32) + bout_ref[...]
    out_ref[0:1, :] = out_t[0:1, :].astype(out_ref.dtype)            # mu
    out_ref[1:2, :] = jnp.exp(out_t[1:2, :]).astype(out_ref.dtype)   # sigma


def init_decoder_params(key, x_dim, y_dim, z_dim, h_dim):
    """PyTorch-like per-layer params in f32, math layout W: (in, out)."""
    input_dim = x_dim + z_dim
    output_dim = y_dim * 2
    dims = [(input_dim, h_dim)] + [(h_dim, h_dim)] * 3 + [(h_dim, output_dim)]
    raw = []
    for i, (din, dout) in enumerate(dims):
        key, kw, kb = jax.random.split(key, 3)
        bound = 1.0 / float(din) ** 0.5
        w = jax.random.uniform(kw, (din, dout), jnp.float32, -bound, bound)
        b = jax.random.uniform(kb, (dout,), jnp.float32, -bound, bound)
        if i < 4:  # Linear followed by BatchNorm1d (gamma=1, beta=0 default)
            raw.append((w, b, jnp.ones((dout,), jnp.float32),
                        jnp.zeros((dout,), jnp.float32)))
        else:
            raw.append((w, b))
    return raw


def pack_decoder_params(raw, x_dim):
    """Pack params into 6 kernel inputs (weights bf16, BN/bias slab f32)."""
    w0 = raw[0][0]
    w0x = w0[:x_dim].astype(jnp.bfloat16)                  # (x_dim, h)
    w0z = w0[x_dim:].astype(jnp.bfloat16)                  # (z_dim, h)
    w_hid = jnp.stack([raw[l][0] for l in (1, 2, 3)]).astype(jnp.bfloat16)
    w_out_t = raw[4][0].T.astype(jnp.bfloat16)             # (2, h)
    gb_rows = []
    for l in range(4):
        _, _bias, g, be = raw[l]                           # Linear bias dropped
        gb_rows += [g, be]
    gb = jnp.stack(gb_rows).astype(jnp.float32)            # (8, h)
    b_out = raw[4][1].reshape(-1, 1).astype(jnp.float32)   # (2, 1)
    return (w0x, w0z, w_hid, w_out_t, gb, b_out)


@jax.jit
def decoder_forward(x, latent, packed):
    batch, num_x, x_dim = x.shape
    n = batch * num_x
    # Lane-dense layer-0 input: (x_dim, N) bf16 -> only sublanes pad (4->8)
    # instead of lanes (4->128), and the HBM DMA of x is halved.
    x_t = x.reshape(n, x_dim).T.astype(jnp.bfloat16)
    lat = latent.astype(jnp.bfloat16)

    vmem = pl.BlockSpec(memory_space=pltpu.MemorySpace.VMEM)
    out_t = pl.pallas_call(
        decoder_kernel,
        out_shape=jax.ShapeDtypeStruct((2, n), jnp.float32),
        in_specs=[vmem] * (2 + len(packed)),
        out_specs=vmem,
        # 32 MiB is safe on every generation; for large N on v5e/v6e raise
        # toward ~100 MiB (128 MiB physical). Do NOT raise on v7x (64 MiB
        # physical) -- that case needs the two-pass N-tiled scheme (TODO above).
        compiler_params=pltpu.CompilerParams(vmem_limit_bytes=32 * 1024 * 1024),
    )(x_t, lat, *packed)

    mu = out_t[0].reshape(batch, num_x, 1)
    sigma = out_t[1].reshape(batch, num_x, 1)
    return mu, sigma


def reference_forward(x, latent, raw):
    """Plain-JAX reference mirroring the PyTorch module (same matmul precision
    policy as the kernel: bf16 matmul inputs, f32 accumulate, f32 BN; keeps
    the Linear biases and a two-pass variance)."""
    batch, num_x, _ = x.shape
    z_dim = latent.shape[-1]
    lat_rep = jnp.broadcast_to(latent[:, None, :], (batch, num_x, z_dim))
    h = jnp.concatenate([x, lat_rep], axis=-1).reshape(batch * num_x, -1)
    for l in range(4):
        w, b, g, be = raw[l]
        z = jnp.dot(h.astype(jnp.bfloat16), w.astype(jnp.bfloat16),
                    preferred_element_type=jnp.float32) + b
        mean = jnp.mean(z, axis=0, keepdims=True)
        var = jnp.mean((z - mean) ** 2, axis=0, keepdims=True)
        h = jnp.maximum((z - mean) / jnp.sqrt(var + BN_EPS) * g + be, 0.0)
    w, b = raw[4]
    z = jnp.dot(h.astype(jnp.bfloat16), w.astype(jnp.bfloat16),
                preferred_element_type=jnp.float32) + b
    z = z.reshape(batch, num_x, -1)
    return z[:, :, 0:1], jnp.exp(z[:, :, 1:2])


if __name__ == "__main__":
    # Small, forward-consistent shapes.
    x_dim, y_dim, z_dim, h_dim = 4, 1, 4, 32
    batch, num_x = 2, 8

    key = jax.random.PRNGKey(0)
    kx, kl, kp = jax.random.split(key, 3)
    x = jax.random.normal(kx, (batch, num_x, x_dim), jnp.float32)
    latent = jax.random.normal(kl, (batch, z_dim), jnp.float32)

    raw_params = init_decoder_params(kp, x_dim, y_dim, z_dim, h_dim)
    packed_params = pack_decoder_params(raw_params, x_dim)

    mu, sigma = decoder_forward(x, latent, packed_params)
    jax.block_until_ready((mu, sigma))

    mu_ref, sigma_ref = reference_forward(x, latent, raw_params)
    assert mu.shape == (batch, num_x, 1) and sigma.shape == (batch, num_x, 1)
    # Tolerance dominated by the shared bf16-matmul policy plus the one-pass
    # (shifted) vs two-pass BN variance difference.
    assert jnp.allclose(mu, mu_ref, atol=1e-2, rtol=1e-2)
    assert jnp.allclose(sigma, sigma_ref, atol=1e-2, rtol=1e-2)

    print("KERNEL_OK")
</pallas_src>

<mosaic_0001>
module attributes {stable_mosaic.version = 11 : i64} {
  func.func @decoder_kernel(%arg0: memref<4x16xbf16, #tpu.memory_space<vmem>>, %arg1: memref<2x4xbf16, #tpu.memory_space<vmem>>, %arg2: memref<4x32xbf16, #tpu.memory_space<vmem>>, %arg3: memref<4x32xbf16, #tpu.memory_space<vmem>>, %arg4: memref<3x32x32xbf16, #tpu.memory_space<vmem>>, %arg5: memref<2x32xbf16, #tpu.memory_space<vmem>>, %arg6: memref<8x32xf32, #tpu.memory_space<vmem>>, %arg7: memref<2x1xf32, #tpu.memory_space<vmem>>, %arg8: memref<2x16xf32, #tpu.memory_space<vmem>>) attributes {dimension_semantics = [], scalar_prefetch = 0 : i64, scratch_operands = 0 : i64, tpu.core_type = #tpu.core_type<tc>} {
    %cst = arith.constant 1.000000e+00 : f32
    %0 = vector.broadcast %cst : f32 to vector<1x16xf32>
    %c0 = arith.constant 0 : index
    %c0_0 = arith.constant 0 : index
    %1 = vector.load %arg0[%c0, %c0_0] : memref<4x16xbf16, #tpu.memory_space<vmem>>, vector<4x16xbf16>
    %c0_1 = arith.constant 0 : index
    %c0_2 = arith.constant 0 : index
    %2 = vector.load %arg2[%c0_1, %c0_2] : memref<4x32xbf16, #tpu.memory_space<vmem>>, vector<4x32xbf16>
    %cst_3 = arith.constant dense<0.000000e+00> : vector<16x32xf32>
    %3 = tpu.matmul %1, %2, %cst_3 {dimension_numbers = #tpu.dot_dimension_numbers<[0], [0], [1], [1], [0, 1, 1, 1], [], []>} : vector<4x16xbf16>, vector<4x32xbf16>, vector<16x32xf32> -> vector<16x32xf32>
    %c0_4 = arith.constant 0 : index
    %c0_5 = arith.constant 0 : index
    %4 = vector.load %arg1[%c0_4, %c0_5] : memref<2x4xbf16, #tpu.memory_space<vmem>>, vector<2x4xbf16>
    %c0_6 = arith.constant 0 : index
    %c0_7 = arith.constant 0 : index
    %5 = vector.load %arg3[%c0_6, %c0_7] : memref<4x32xbf16, #tpu.memory_space<vmem>>, vector<4x32xbf16>
    %cst_8 = arith.constant dense<0.000000e+00> : vector<2x32xf32>
    %6 = tpu.matmul %4, %5, %cst_8 {dimension_numbers = #tpu.dot_dimension_numbers<[1], [0], [0], [1], [0, 0, 1, 1], [], []>} : vector<2x4xbf16>, vector<4x32xbf16>, vector<2x32xf32> -> vector<2x32xf32>
    %7 = vector.shape_cast %3 : vector<16x32xf32> to vector<2x8x32xf32>
    %8 = vector.shape_cast %6 : vector<2x32xf32> to vector<2x1x32xf32>
    %9 = vector.broadcast %8 : vector<2x1x32xf32> to vector<2x8x32xf32>
    %10 = arith.addf %7, %9 : vector<2x8x32xf32>
    %11 = vector.shape_cast %10 : vector<2x8x32xf32> to vector<16x32xf32>
    %c0_9 = arith.constant 0 : index
    %c0_10 = arith.constant 0 : index
    %12 = vector.load %arg6[%c0_9, %c0_10] : memref<8x32xf32, #tpu.memory_space<vmem>>, vector<1x32xf32>
    %c1 = arith.constant 1 : index
    %c0_11 = arith.constant 0 : index
    %13 = vector.load %arg6[%c1, %c0_11] : memref<8x32xf32, #tpu.memory_space<vmem>>, vector<1x32xf32>
    %14 = vector.extract_strided_slice %11 {offsets = [0, 0], sizes = [1, 32], strides = [1, 1]} : vector<16x32xf32> to vector<1x32xf32>
    %15 = vector.broadcast %14 : vector<1x32xf32> to vector<16x32xf32>
    %16 = arith.subf %11, %15 : vector<16x32xf32>
    %cst_12 = arith.constant dense<0.000000e+00> : vector<1x32xf32>
    %17 = tpu.matmul %0, %16, %cst_12 {dimension_numbers = #tpu.dot_dimension_numbers<[1], [0], [0], [1], [0, 0, 1, 1], [], []>} : vector<1x16xf32>, vector<16x32xf32>, vector<1x32xf32> -> vector<1x32xf32>
    %18 = arith.mulf %16, %16 : vector<16x32xf32>
    %cst_13 = arith.constant dense<0.000000e+00> : vector<1x32xf32>
    %19 = tpu.matmul %0, %18, %cst_13 {dimension_numbers = #tpu.dot_dimension_numbers<[1], [0], [0], [1], [0, 0, 1, 1], [], []>} : vector<1x16xf32>, vector<16x32xf32>, vector<1x32xf32> -> vector<1x32xf32>
    %cst_14 = arith.constant 6.250000e-02 : f32
    %20 = vector.broadcast %cst_14 : f32 to vector<1x32xf32>
    %21 = arith.mulf %17, %20 : vector<1x32xf32>
    %cst_15 = arith.constant 6.250000e-02 : f32
    %22 = vector.broadcast %cst_15 : f32 to vector<1x32xf32>
    %23 = arith.mulf %19, %22 : vector<1x32xf32>
    %24 = arith.mulf %21, %21 : vector<1x32xf32>
    %25 = arith.subf %23, %24 : vector<1x32xf32>
    %cst_16 = arith.constant 0.000000e+00 : f32
    %26 = vector.broadcast %cst_16 : f32 to vector<1x32xf32>
    %27 = arith.maximumf %25, %26 : vector<1x32xf32>
    %28 = vector.broadcast %21 : vector<1x32xf32> to vector<16x32xf32>
    %29 = arith.subf %16, %28 : vector<16x32xf32>
    %cst_17 = arith.constant 9.99999974E-6 : f32
    %30 = vector.broadcast %cst_17 : f32 to vector<1x32xf32>
    %31 = arith.addf %27, %30 : vector<1x32xf32>
    %32 = math.rsqrt %31 : vector<1x32xf32>
    %33 = vector.broadcast %32 : vector<1x32xf32> to vector<16x32xf32>
    %34 = arith.mulf %29, %33 : vector<16x32xf32>
    %35 = vector.broadcast %12 : vector<1x32xf32> to vector<16x32xf32>
    %36 = arith.mulf %34, %35 : vector<16x32xf32>
    %37 = vector.broadcast %13 : vector<1x32xf32> to vector<16x32xf32>
    %38 = arith.addf %36, %37 : vector<16x32xf32>
    %cst_18 = arith.constant 0.000000e+00 : f32
    %39 = vector.broadcast %cst_18 : f32 to vector<16x32xf32>
    %40 = arith.maximumf %38, %39 : vector<16x32xf32>
    %41 = arith.truncf %40 : vector<16x32xf32> to vector<16x32xbf16>
    %c0_19 = arith.constant 0 : index
    %c0_20 = arith.constant 0 : index
    %c0_21 = arith.constant 0 : index
    %42 = vector.load %arg4[%c0_19, %c0_20, %c0_21] : memref<3x32x32xbf16, #tpu.memory_space<vmem>>, vector<1x32x32xbf16>
    %43 = vector.shape_cast %42 : vector<1x32x32xbf16> to vector<32x32xbf16>
    %cst_22 = arith.constant dense<0.000000e+00> : vector<16x32xf32>
    %44 = tpu.matmul %41, %43, %cst_22 {dimension_numbers = #tpu.dot_dimension_numbers<[1], [0], [0], [1], [0, 0, 1, 1], [], []>} : vector<16x32xbf16>, vector<32x32xbf16>, vector<16x32xf32> -> vector<16x32xf32>
    %c2 = arith.constant 2 : index
    %c0_23 = arith.constant 0 : index
    %45 = vector.load %arg6[%c2, %c0_23] : memref<8x32xf32, #tpu.memory_space<vmem>>, vector<1x32xf32>
    %c3 = arith.constant 3 : index
    %c0_24 = arith.constant 0 : index
    %46 = vector.load %arg6[%c3, %c0_24] : memref<8x32xf32, #tpu.memory_space<vmem>>, vector<1x32xf32>
    %47 = vector.extract_strided_slice %44 {offsets = [0, 0], sizes = [1, 32], strides = [1, 1]} : vector<16x32xf32> to vector<1x32xf32>
    %48 = vector.broadcast %47 : vector<1x32xf32> to vector<16x32xf32>
    %49 = arith.subf %44, %48 : vector<16x32xf32>
    %cst_25 = arith.constant dense<0.000000e+00> : vector<1x32xf32>
    %50 = tpu.matmul %0, %49, %cst_25 {dimension_numbers = #tpu.dot_dimension_numbers<[1], [0], [0], [1], [0, 0, 1, 1], [], []>} : vector<1x16xf32>, vector<16x32xf32>, vector<1x32xf32> -> vector<1x32xf32>
    %51 = arith.mulf %49, %49 : vector<16x32xf32>
    %cst_26 = arith.constant dense<0.000000e+00> : vector<1x32xf32>
    %52 = tpu.matmul %0, %51, %cst_26 {dimension_numbers = #tpu.dot_dimension_numbers<[1], [0], [0], [1], [0, 0, 1, 1], [], []>} : vector<1x16xf32>, vector<16x32xf32>, vector<1x32xf32> -> vector<1x32xf32>
    %cst_27 = arith.constant 6.250000e-02 : f32
    %53 = vector.broadcast %cst_27 : f32 to vector<1x32xf32>
    %54 = arith.mulf %50, %53 : vector<1x32xf32>
    %cst_28 = arith.constant 6.250000e-02 : f32
    %55 = vector.broadcast %cst_28 : f32 to vector<1x32xf32>
    %56 = arith.mulf %52, %55 : vector<1x32xf32>
    %57 = arith.mulf %54, %54 : vector<1x32xf32>
    %58 = arith.subf %56, %57 : vector<1x32xf32>
    %cst_29 = arith.constant 0.000000e+00 : f32
    %59 = vector.broadcast %cst_29 : f32 to vector<1x32xf32>
    %60 = arith.maximumf %58, %59 : vector<1x32xf32>
    %61 = vector.broadcast %54 : vector<1x32xf32> to vector<16x32xf32>
    %62 = arith.subf %49, %61 : vector<16x32xf32>
    %cst_30 = arith.constant 9.99999974E-6 : f32
    %63 = vector.broadcast %cst_30 : f32 to vector<1x32xf32>
    %64 = arith.addf %60, %63 : vector<1x32xf32>
    %65 = math.rsqrt %64 : vector<1x32xf32>
    %66 = vector.broadcast %65 : vector<1x32xf32> to vector<16x32xf32>
    %67 = arith.mulf %62, %66 : vector<16x32xf32>
    %68 = vector.broadcast %45 : vector<1x32xf32> to vector<16x32xf32>
    %69 = arith.mulf %67, %68 : vector<16x32xf32>
    %70 = vector.broadcast %46 : vector<1x32xf32> to vector<16x32xf32>
    %71 = arith.addf %69, %70 : vector<16x32xf32>
    %cst_31 = arith.constant 0.000000e+00 : f32
    %72 = vector.broadcast %cst_31 : f32 to vector<16x32xf32>
    %73 = arith.maximumf %71, %72 : vector<16x32xf32>
    %74 = arith.truncf %73 : vector<16x32xf32> to vector<16x32xbf16>
    %c1_32 = arith.constant 1 : index
    %c0_33 = arith.constant 0 : index
    %c0_34 = arith.constant 0 : index
    %75 = vector.load %arg4[%c1_32, %c0_33, %c0_34] : memref<3x32x32xbf16, #tpu.memory_space<vmem>>, vector<1x32x32xbf16>
    %76 = vector.shape_cast %75 : vector<1x32x32xbf16> to vector<32x32xbf16>
    %cst_35 = arith.constant dense<0.000000e+00> : vector<16x32xf32>
    %77 = tpu.matmul %74, %76, %cst_35 {dimension_numbers = #tpu.dot_dimension_numbers<[1], [0], [0], [1], [0, 0, 1, 1], [], []>} : vector<16x32xbf16>, vector<32x32xbf16>, vector<16x32xf32> -> vector<16x32xf32>
    %c4 = arith.constant 4 : index
    %c0_36 = arith.constant 0 : index
    %78 = vector.load %arg6[%c4, %c0_36] : memref<8x32xf32, #tpu.memory_space<vmem>>, vector<1x32xf32>
    %c5 = arith.constant 5 : index
    %c0_37 = arith.constant 0 : index
    %79 = vector.load %arg6[%c5, %c0_37] : memref<8x32xf32, #tpu.memory_space<vmem>>, vector<1x32xf32>
    %80 = vector.extract_strided_slice %77 {offsets = [0, 0], sizes = [1, 32], strides = [1, 1]} : vector<16x32xf32> to vector<1x32xf32>
    %81 = vector.broadcast %80 : vector<1x32xf32> to vector<16x32xf32>
    %82 = arith.subf %77, %81 : vector<16x32xf32>
    %cst_38 = arith.constant dense<0.000000e+00> : vector<1x32xf32>
    %83 = tpu.matmul %0, %82, %cst_38 {dimension_numbers = #tpu.dot_dimension_numbers<[1], [0], [0], [1], [0, 0, 1, 1], [], []>} : vector<1x16xf32>, vector<16x32xf32>, vector<1x32xf32> -> vector<1x32xf32>
    %84 = arith.mulf %82, %82 : vector<16x32xf32>
    %cst_39 = arith.constant dense<0.000000e+00> : vector<1x32xf32>
    %85 = tpu.matmul %0, %84, %cst_39 {dimension_numbers = #tpu.dot_dimension_numbers<[1], [0], [0], [1], [0, 0, 1, 1], [], []>} : vector<1x16xf32>, vector<16x32xf32>, vector<1x32xf32> -> vector<1x32xf32>
    %cst_40 = arith.constant 6.250000e-02 : f32
    %86 = vector.broadcast %cst_40 : f32 to vector<1x32xf32>
    %87 = arith.mulf %83, %86 : vector<1x32xf32>
    %cst_41 = arith.constant 6.250000e-02 : f32
    %88 = vector.broadcast %cst_41 : f32 to vector<1x32xf32>
    %89 = arith.mulf %85, %88 : vector<1x32xf32>
    %90 = arith.mulf %87, %87 : vector<1x32xf32>
    %91 = arith.subf %89, %90 : vector<1x32xf32>
    %cst_42 = arith.constant 0.000000e+00 : f32
    %92 = vector.broadcast %cst_42 : f32 to vector<1x32xf32>
    %93 = arith.maximumf %91, %92 : vector<1x32xf32>
    %94 = vector.broadcast %87 : vector<1x32xf32> to vector<16x32xf32>
    %95 = arith.subf %82, %94 : vector<16x32xf32>
    %cst_43 = arith.constant 9.99999974E-6 : f32
    %96 = vector.broadcast %cst_43 : f32 to vector<1x32xf32>
    %97 = arith.addf %93, %96 : vector<1x32xf32>
    %98 = math.rsqrt %97 : vector<1x32xf32>
    %99 = vector.broadcast %98 : vector<1x32xf32> to vector<16x32xf32>
    %100 = arith.mulf %95, %99 : vector<16x32xf32>
    %101 = vector.broadcast %78 : vector<1x32xf32> to vector<16x32xf32>
    %102 = arith.mulf %100, %101 : vector<16x32xf32>
    %103 = vector.broadcast %79 : vector<1x32xf32> to vector<16x32xf32>
    %104 = arith.addf %102, %103 : vector<16x32xf32>
    %cst_44 = arith.constant 0.000000e+00 : f32
    %105 = vector.broadcast %cst_44 : f32 to vector<16x32xf32>
    %106 = arith.maximumf %104, %105 : vector<16x32xf32>
    %107 = arith.truncf %106 : vector<16x32xf32> to vector<16x32xbf16>
    %c2_45 = arith.constant 2 : index
    %c0_46 = arith.constant 0 : index
    %c0_47 = arith.constant 0 : index
    %108 = vector.load %arg4[%c2_45, %c0_46, %c0_47] : memref<3x32x32xbf16, #tpu.memory_space<vmem>>, vector<1x32x32xbf16>
    %109 = vector.shape_cast %108 : vector<1x32x32xbf16> to vector<32x32xbf16>
    %cst_48 = arith.constant dense<0.000000e+00> : vector<16x32xf32>
    %110 = tpu.matmul %107, %109, %cst_48 {dimension_numbers = #tpu.dot_dimension_numbers<[1], [0], [0], [1], [0, 0, 1, 1], [], []>} : vector<16x32xbf16>, vector<32x32xbf16>, vector<16x32xf32> -> vector<16x32xf32>
    %c6 = arith.constant 6 : index
    %c0_49 = arith.constant 0 : index
    %111 = vector.load %arg6[%c6, %c0_49] : memref<8x32xf32, #tpu.memory_space<vmem>>, vector<1x32xf32>
    %c7 = arith.constant 7 : index
    %c0_50 = arith.constant 0 : index
    %112 = vector.load %arg6[%c7, %c0_50] : memref<8x32xf32, #tpu.memory_space<vmem>>, vector<1x32xf32>
    %113 = vector.extract_strided_slice %110 {offsets = [0, 0], sizes = [1, 32], strides = [1, 1]} : vector<16x32xf32> to vector<1x32xf32>
    %114 = vector.broadcast %113 : vector<1x32xf32> to vector<16x32xf32>
    %115 = arith.subf %110, %114 : vector<16x32xf32>
    %cst_51 = arith.constant dense<0.000000e+00> : vector<1x32xf32>
    %116 = tpu.matmul %0, %115, %cst_51 {dimension_numbers = #tpu.dot_dimension_numbers<[1], [0], [0], [1], [0, 0, 1, 1], [], []>} : vector<1x16xf32>, vector<16x32xf32>, vector<1x32xf32> -> vector<1x32xf32>
    %117 = arith.mulf %115, %115 : vector<16x32xf32>
    %cst_52 = arith.constant dense<0.000000e+00> : vector<1x32xf32>
    %118 = tpu.matmul %0, %117, %cst_52 {dimension_numbers = #tpu.dot_dimension_numbers<[1], [0], [0], [1], [0, 0, 1, 1], [], []>} : vector<1x16xf32>, vector<16x32xf32>, vector<1x32xf32> -> vector<1x32xf32>
    %cst_53 = arith.constant 6.250000e-02 : f32
    %119 = vector.broadcast %cst_53 : f32 to vector<1x32xf32>
    %120 = arith.mulf %116, %119 : vector<1x32xf32>
    %cst_54 = arith.constant 6.250000e-02 : f32
    %121 = vector.broadcast %cst_54 : f32 to vector<1x32xf32>
    %122 = arith.mulf %118, %121 : vector<1x32xf32>
    %123 = arith.mulf %120, %120 : vector<1x32xf32>
    %124 = arith.subf %122, %123 : vector<1x32xf32>
    %cst_55 = arith.constant 0.000000e+00 : f32
    %125 = vector.broadcast %cst_55 : f32 to vector<1x32xf32>
    %126 = arith.maximumf %124, %125 : vector<1x32xf32>
    %127 = vector.broadcast %120 : vector<1x32xf32> to vector<16x32xf32>
    %128 = arith.subf %115, %127 : vector<16x32xf32>
    %cst_56 = arith.constant 9.99999974E-6 : f32
    %129 = vector.broadcast %cst_56 : f32 to vector<1x32xf32>
    %130 = arith.addf %126, %129 : vector<1x32xf32>
    %131 = math.rsqrt %130 : vector<1x32xf32>
    %132 = vector.broadcast %131 : vector<1x32xf32> to vector<16x32xf32>
    %133 = arith.mulf %128, %132 : vector<16x32xf32>
    %134 = vector.broadcast %111 : vector<1x32xf32> to vector<16x32xf32>
    %135 = arith.mulf %133, %134 : vector<16x32xf32>
    %136 = vector.broadcast %112 : vector<1x32xf32> to vector<16x32xf32>
    %137 = arith.addf %135, %136 : vector<16x32xf32>
    %cst_57 = arith.constant 0.000000e+00 : f32
    %138 = vector.broadcast %cst_57 : f32 to vector<16x32xf32>
    %139 = arith.maximumf %137, %138 : vector<16x32xf32>
    %c0_58 = arith.constant 0 : index
    %c0_59 = arith.constant 0 : index
    %140 = vector.load %arg5[%c0_58, %c0_59] : memref<2x32xbf16, #tpu.memory_space<vmem>>, vector<2x32xbf16>
    %141 = arith.truncf %139 : vector<16x32xf32> to vector<16x32xbf16>
    %cst_60 = arith.constant dense<0.000000e+00> : vector<2x16xf32>
    %142 = tpu.matmul %140, %141, %cst_60 {dimension_numbers = #tpu.dot_dimension_numbers<[1], [1], [0], [0], [0, 0, 1, 0], [], []>} : vector<2x32xbf16>, vector<16x32xbf16>, vector<2x16xf32> -> vector<2x16xf32>
    %c0_61 = arith.constant 0 : index
    %c0_62 = arith.constant 0 : index
    %143 = vector.load %arg7[%c0_61, %c0_62] : memref<2x1xf32, #tpu.memory_space<vmem>>, vector<2x1xf32>
    %144 = vector.broadcast %143 : vector<2x1xf32> to vector<2x16xf32>
    %145 = arith.addf %142, %144 : vector<2x16xf32>
    %146 = vector.extract_strided_slice %145 {offsets = [0, 0], sizes = [1, 16], strides = [1, 1]} : vector<2x16xf32> to vector<1x16xf32>
    %c0_63 = arith.constant 0 : index
    %c0_64 = arith.constant 0 : index
    %147 = vector.load %arg8[%c0_63, %c0_64] : memref<2x16xf32, #tpu.memory_space<vmem>>, vector<1x16xf32>
    tpu.vector_store %arg8[%c0_63, %c0_64], %146 {strides = array<i32>} : memref<2x16xf32, #tpu.memory_space<vmem>>, vector<1x16xf32>,
    %148 = vector.extract_strided_slice %145 {offsets = [1, 0], sizes = [1, 16], strides = [1, 1]} : vector<2x16xf32> to vector<1x16xf32>
    %149 = math.exp %148 : vector<1x16xf32>
    %c1_65 = arith.constant 1 : index
    %c0_66 = arith.constant 0 : index
    %150 = vector.load %arg8[%c1_65, %c0_66] : memref<2x16xf32, #tpu.memory_space<vmem>>, vector<1x16xf32>
    tpu.vector_store %arg8[%c1_65, %c0_66], %149 {strides = array<i32>} : memref<2x16xf32, #tpu.memory_space<vmem>>, vector<1x16xf32>,
    return
  }
}

</mosaic_0001>

<llo_original>
// kernel: squeeze.2
$region0: #{squeeze.2}
  %s0 = inlined_call_operand.vmem [shape: f32[16], index: 0, kind: input, shape index: {}]
  %s1 = inlined_call_operand.hbm [shape: f32[2,8,1], index: 1, kind: output, shape index: {}]
  $region1: #{squeeze.2} parent=0
    #allocation0 [shape = 'u8[1024]{0}', space=vmem, size = 0x400, scoped, tag = 'operand span for operand 1']
    #allocation1 [shape = 's32[1]{0}', space=sflag, size = 0x4, scoped, tag = 'scoped memory for squeeze.2']
    #allocation2 [shape = 'u8[4096]{0}', space=vmem, size = 0x1000, scoped, tag = 'scoped mem for output reshape']
    #allocation3 [shape = 'u8[4096]{0}', space=vmem, size = 0x1000, scoped, tag = 'scoped mem for input reshape']
    %2 = vsyncpa [#allocation1], 0
    %s4 = sshllo.u32 0, 1
    %v5 = vld [vmem:[%s0] sm:%s4]
    %6 = vst [vmem:[#allocation3] sm:%s4] %v5
    %v7 = vld [vmem:[#allocation3] sm:$0x1]
    %vm8 = vcmask 64512
    %9 = vst.msk [vmem:[#allocation2] sm:$0x1] %vm8, %v7
    %v10 = vld [vmem:[#allocation3] sm:$0x1]
    %11 = vrot.lane.b32.xlu0 %v10, 120
    %v12 = vpop.permute.xlu0 %11
    %vm13 = vcmask 64512
    %s14 = scalar_lea.vmem [#allocation2], 1
    %15 = vst.msk [vmem:[%s14] sm:$0x1] %vm13, %v12
    %s17 = sshllo.u32 0, 2
    %v19 = vld [vmem:[#allocation2] sm:%s17]
    %s20 = sshllo.u32 0, 2
    %21 = vst [vmem:[#allocation0] sm:%s20] %v19
    %s23 = ssub.s32 32, 32
    %24 = vsyncadd [#allocation1], %s23
    %s26 = sshll.u32 [#allocation0], 4
    %s27 = int_to_ptr.vmem [resolvable:$true] %s26
    %29 = dma.vmem_to_hbm [thread:$0]  %s27, 32, %s1, [#allocation1]
    %30 = dma.done [#allocation1], 32
    %31 = vsyncpa [#allocation1], 1

// kernel: decoder_forward.1
$region0: #{decoder_forward.1}
  #allocation0 [shape = 'u32[]', space=smem, size = 0x4, offset = 0x4, fixed_abs, tag = 'smem constant byte address 0x4 - core index']
  #allocation1 [shape = 'u32[144,128]{1,0:T(1,128)}', space=vmem, size = 0x12000, scoped, tag = 'internal scratch']
  %s0 = inlined_call_operand.vmem [shape: bf16[4,16], index: 0, kind: input, shape index: {}]
  %s1 = inlined_call_operand.vmem [shape: bf16[2,4], index: 1, kind: input, shape index: {}]
  %s2 = inlined_call_operand.vmem [shape: bf16[4,32], index: 2, kind: input, shape index: {}]
  %s3 = inlined_call_operand.vmem [shape: bf16[4,32], index: 3, kind: input, shape index: {}]
  %s4 = inlined_call_operand.hbm [shape: bf16[3,32,32], index: 4, kind: input, shape index: {}]
  %s5 = inlined_call_operand.vmem [shape: bf16[2,32], index: 5, kind: input, shape index: {}]
  %s6 = inlined_call_operand.vmem [shape: f32[8,32], index: 6, kind: input, shape index: {}]
  %s7 = inlined_call_operand.vmem [shape: f32[2,1], index: 7, kind: input, shape index: {}]
  %s8 = inlined_call_operand.vmem [shape: f32[2,16], index: 8, kind: output, shape index: {}]
  %s9 = sld [smem:[#allocation0]]
  $region46: #{decoder_forward.1} parent=0
    _
  %s11 = ssub.s32 1, %s9
  %s12 = scalar_select 0, %s11, %s9
  $region1: #{decoder_forward.1} parent=0
    #allocation2 [shape = 'u8[24576]{0}', space=vmem, size = 0x6000, scoped, tag = 'input window, operand 4, single buffered']
    #allocation3 [shape = 's32[1]{0}', space=sflag, size = 0x4, scoped, tag = 'scoped memory for decoder_forward.1']
    %13 = vsyncpa [#allocation3], 0
    // Predicated region
    $region2: #{decoder_forward.1} parent=1 // pred_check
      _
    $region3: #{decoder_forward.1} parent=1 // pred_check_branch
      %15 = sbr.rel (0) target = $region5
    $region4: #{decoder_forward.1} parent=1 // pred_region
      _
    $region5: #{decoder_forward.1} parent=1 // pred_fallthru
      _
    // Predicated region
    $region6: #{decoder_forward.1} parent=1 // pred_check
      _
    $region7: #{decoder_forward.1} parent=1 // pred_check_branch
      %17 = sbr.rel (0) target = $region9
    $region8: #{decoder_forward.1} parent=1 // pred_region
      _
    $region9: #{decoder_forward.1} parent=1 // pred_fallthru
      _
    // Predicated region
    $region10: #{decoder_forward.1} parent=1 // pred_check
      _
    $region11: #{decoder_forward.1} parent=1 // pred_check_branch
      %19 = sbr.rel (0) target = $region13
    $region12: #{decoder_forward.1} parent=1 // pred_region
      _
    $region13: #{decoder_forward.1} parent=1 // pred_fallthru
      _
    // Predicated region
    $region14: #{decoder_forward.1} parent=1 // pred_check
      _
    $region15: #{decoder_forward.1} parent=1 // pred_check_branch
      %21 = sbr.rel (0) target = $region17
    $region16: #{decoder_forward.1} parent=1 // pred_region
      _
    $region17: #{decoder_forward.1} parent=1 // pred_fallthru
      _
    // Predicated region
    $region18: #{decoder_forward.1} parent=1 // pred_check
      _
    $region19: #{decoder_forward.1} parent=1 // pred_check_branch
      %23 = sbr.rel (0) target = $region21
    $region20: #{decoder_forward.1} parent=1 // pred_region
      %s25 = ssub.s32 768, 768
      %26 = vsyncadd [#allocation3], %s25
      %s27 = sshll.u32 [#allocation2], 4
      %s28 = int_to_ptr.vmem [resolvable:$true] %s27
      %33 = dma.hbm_to_vmem [thread:$0]  %s4, 768, %s28, [#allocation3], 64, 64, 4
    $region21: #{decoder_forward.1} parent=1 // pred_fallthru
      _
    // Predicated region
    $region22: #{decoder_forward.1} parent=1 // pred_check
      _
    $region23: #{decoder_forward.1} parent=1 // pred_check_branch
      %35 = sbr.rel (0) target = $region25
    $region24: #{decoder_forward.1} parent=1 // pred_region
      _
    $region25: #{decoder_forward.1} parent=1 // pred_fallthru
      _
    // Predicated region
    $region26: #{decoder_forward.1} parent=1 // pred_check
      _
    $region27: #{decoder_forward.1} parent=1 // pred_check_branch
      %37 = sbr.rel (0) target = $region29
    $region28: #{decoder_forward.1} parent=1 // pred_region
      _
    $region29: #{decoder_forward.1} parent=1 // pred_fallthru
      _
    // Predicated region
    $region30: #{decoder_forward.1} parent=1 // pred_check
      _
    $region31: #{decoder_forward.1} parent=1 // pred_check_branch
      %39 = sbr.rel (0) target = $region33
    $region32: #{decoder_forward.1} parent=1 // pred_region
      _
    $region33: #{decoder_forward.1} parent=1 // pred_fallthru
      _
    // Predicated region
    $region34: #{decoder_forward.1} parent=1 // pred_check
      _
    $region35: #{decoder_forward.1} parent=1 // pred_check_branch
      %41 = sbr.rel (0) target = $region37
    $region36: #{decoder_forward.1} parent=1 // pred_region
      %42 = dma.done [#allocation3], 768
    $region37: #{decoder_forward.1} parent=1 // pred_fallthru
      _
    %v44 = vld [vmem:[%s0] sm:$0x3]
    %v45 = vld [vmem:[%s2] sm:$0x3]
    %46 = vxpose.xlu0.c.b16.start [1/8] %v44, 128
    %47 = vxpose.xlu0.c.b16.cont [2/8] 0, 128
    %48 = vxpose.xlu0.c.b16.cont [3/8] 0, 128
    %49 = vxpose.xlu0.c.b16.cont [4/8] 0, 128
    %50 = vxpose.xlu0.c.b16.cont [5/8] 0, 128
    %51 = vxpose.xlu0.c.b16.cont [6/8] 0, 128
    %52 = vxpose.xlu0.c.b16.cont [7/8] 0, 128
    %53 = vxpose.xlu0.c.b16.end [8/8] 0, 128
    %v54 = vpop.trf.xlu0
    %v55 = vpop.trf.xlu0
    %v56 = vpop.trf.xlu0
    %v57 = vpop.trf.xlu0
    %v58 = vpop.trf.xlu0
    %v59 = vpop.trf.xlu0
    %v60 = vpop.trf.xlu0
    %v61 = vpop.trf.xlu0
    %vm62 = vcmask 31744
    %v64 = vsel %vm62, %v54, 0
    %vm66 = vcmask 1041408
    %v68 = vsel %vm66, %v45, 0
    %70 = vmatprep.subr.bf16.mxu0 0
    %71 = vmatpush1.bf16.msra.mxu0 %v68
    %72 = vmatprep.subr.bf16.mxu0 0
    %73 = vmatpush1.bf16.msra.mxu0 0
    %74 = vmatprep.subr.bf16.mxu0 0
    %75 = vmatpush1.bf16.msra.mxu0 0
    %76 = vmatprep.subr.bf16.mxu0 0
    %77 = vmatpush1.bf16.msra.mxu0 0
    %78 = vmatprep.subr.bf16.mxu0 0
    %79 = vmatpush1.bf16.msra.mxu0 0
    %80 = vmatprep.subr.bf16.mxu0 0
    %81 = vmatpush1.bf16.msra.mxu0 0
    %82 = vmatprep.subr.bf16.mxu0 0
    %83 = vmatpush1.bf16.msra.mxu0 0
    %84 = vmatprep.subr.bf16.mxu0 0
    %85 = vmatpush1.bf16.msra.mxu0 0
    %86 = vmatprep.subr.bf16.mxu0 0
    %87 = vmatpush1.bf16.msra.mxu0 0
    %88 = vmatprep.subr.bf16.mxu0 0
    %89 = vmatpush1.bf16.msra.mxu0 0
    %90 = vmatprep.subr.bf16.mxu0 0
    %91 = vmatpush1.bf16.msra.mxu0 0
    %92 = vmatprep.subr.bf16.mxu0 0
    %93 = vmatpush1.bf16.msra.mxu0 0
    %94 = vmatprep.subr.bf16.mxu0 0
    %95 = vmatpush1.bf16.msra.mxu0 0
    %96 = vmatprep.subr.bf16.mxu0 0
    %97 = vmatpush1.bf16.msra.mxu0 0
    %98 = vmatprep.subr.bf16.mxu0 0
    %99 = vmatpush1.bf16.msra.mxu0 0
    %100 = vmatprep.subr.bf16.mxu0 0
    %101 = vmatpush1.bf16.msra.mxu0 0
    %102 = vmatprep.mubr.bf16.mxu0 0
    %103 = vmatmul.mubr.bf16.gmra.mrb[0].mxu0 %v64
    %v104 = vpop.f32.mrb[0].mxu0
    %v105 = vadd.f32 0.0, %v104
    %v106 = vpop.f32.mrb[0].mxu0
    %v107 = vpop.f32.mrb[0].mxu0
    %v108 = vadd.f32 0.0, %v107
    %v109 = vpop.f32.mrb[0].mxu0
    %110 = vdwg.mxu0
    %v111 = vld [vmem:[%s1] sm:$0x1]
    %v112 = vld [vmem:[%s3] sm:$0x3]
    %v114 = vsel %vm62, %v111, 0
    %v117 = vsel %vm66, %v112, 0
    %119 = vmatprep.subr.bf16.mxu0 0
    %120 = vmatpush1.bf16.msra.mxu0 %v117
    %121 = vmatprep.subr.bf16.mxu0 0
    %122 = vmatpush1.bf16.msra.mxu0 0
    %123 = vmatprep.subr.bf16.mxu0 0
    %124 = vmatpush1.bf16.msra.mxu0 0
    %125 = vmatprep.subr.bf16.mxu0 0
    %126 = vmatpush1.bf16.msra.mxu0 0
    %127 = vmatprep.subr.bf16.mxu0 0
    %128 = vmatpush1.bf16.msra.mxu0 0
    %129 = vmatprep.subr.bf16.mxu0 0
    %130 = vmatpush1.bf16.msra.mxu0 0
    %131 = vmatprep.subr.bf16.mxu0 0
    %132 = vmatpush1.bf16.msra.mxu0 0
    %133 = vmatprep.subr.bf16.mxu0 0
    %134 = vmatpush1.bf16.msra.mxu0 0
    %135 = vmatprep.subr.bf16.mxu0 0
    %136 = vmatpush1.bf16.msra.mxu0 0
    %137 = vmatprep.subr.bf16.mxu0 0
    %138 = vmatpush1.bf16.msra.mxu0 0
    %139 = vmatprep.subr.bf16.mxu0 0
    %140 = vmatpush1.bf16.msra.mxu0 0
    %141 = vmatprep.subr.bf16.mxu0 0
    %142 = vmatpush1.bf16.msra.mxu0 0
    %143 = vmatprep.subr.bf16.mxu0 0
    %144 = vmatpush1.bf16.msra.mxu0 0
    %145 = vmatprep.subr.bf16.mxu0 0
    %146 = vmatpush1.bf16.msra.mxu0 0
    %147 = vmatprep.subr.bf16.mxu0 0
    %148 = vmatpush1.bf16.msra.mxu0 0
    %149 = vmatprep.subr.bf16.mxu0 0
    %150 = vmatpush1.bf16.msra.mxu0 0
    %151 = vmatprep.mubr.bf16.mxu0 0
    %152 = vmatmul.mubr.bf16.gmra.mrb[0].mxu0 %v114
    %v153 = vpop.f32.mrb[0].mxu0
    %v154 = vadd.f32 0.0, %v153
    %v155 = vpop.f32.mrb[0].mxu0
    %v156 = vpop.f32.mrb[0].mxu0
    %v157 = vpop.f32.mrb[0].mxu0
    %158 = vdwg.mxu0
    %v161 = vunpack.c.l.s4 1966171168
    %v162 = vunpack.c.0.s8 %v161
    %v163 = vlaneseq
    %v164 = vshrl.u32 %v163, 7
    %v165 = vsub.s32 %v162, %v164
    %v166 = vrot.slane %v154, %v165
    %v167 = vcombine.high %v166, %v166
    %v169 = vunpack.c.l.s4 1966171168
    %v170 = vunpack.c.0.s8 %v169
    %v171 = vlaneseq
    %v172 = vshrl.u32 %v171, 7
    %v173 = vsub.s32 %v170, %v172
    %v174 = vrot.slane %v166, %v173
    %v176 = vunpack.c.l.s4 1966171168
    %v177 = vunpack.c.0.s8 %v176
    %v178 = vlaneseq
    %v179 = vshrl.u32 %v178, 7
    %v180 = vsub.s32 %v177, %v179
    %v181 = vrot.slane %v167, %v180
    %v182 = vlaneseq
    %v183 = vshrl.u32 %v182, 7
    %v184 = vsub.s32 0, %v183
    %v185 = vrot.slane %v174, %v184
    %v186 = vlaneseq
    %v187 = vshrl.u32 %v186, 7
    %v188 = vsub.s32 0, %v187
    %v189 = vrot.slane %v181, %v188
    %v192 = vadd.f32 %v105, %v185
    %v193 = vadd.f32 %v108, %v189
    %v194 = vld [vmem:[%s6] sm:$0x1]
    %v195 = vld [vmem:[%s6 + $0x1] sm:$0x1]
    %v196 = vlaneseq
    %v197 = vshrl.u32 %v196, 7
    %v198 = vsub.s32 0, %v197
    %v199 = vrot.slane %v192, %v198
    %v200 = vsub.f32 %v192, %v199
    %v201 = vsub.f32 %v193, %v199
    %vm202 = vcmask 130048
    %v204 = vsel %vm202, 1.0, 0
    %206 = vmatprep.subr.mxu0 0.0
    %207 = vmatpush1.msra.mxu0 %v200
    %208 = vmatprep.subr.mxu0 0.0
    %209 = vmatpush1.msra.mxu0 %v201
    %210 = vmatprep.subr.mxu0 0.0
    %211 = vmatpush1.msra.mxu0 0.0
    %212 = vmatprep.subr.mxu0 0.0
    %213 = vmatpush1.msra.mxu0 0.0
    %214 = vmatprep.subr.mxu0 0.0
    %215 = vmatpush1.msra.mxu0 0.0
    %216 = vmatprep.subr.mxu0 0.0
    %217 = vmatpush1.msra.mxu0 0.0
    %218 = vmatprep.subr.mxu0 0.0
    %219 = vmatpush1.msra.mxu0 0.0
    %220 = vmatprep.subr.mxu0 0.0
    %221 = vmatpush1.msra.mxu0 0.0
    %222 = vmatprep.subr.mxu0 0.0
    %223 = vmatpush1.msra.mxu0 0.0
    %224 = vmatprep.subr.mxu0 0.0
    %225 = vmatpush1.msra.mxu0 0.0
    %226 = vmatprep.subr.mxu0 0.0
    %227 = vmatpush1.msra.mxu0 0.0
    %228 = vmatprep.subr.mxu0 0.0
    %229 = vmatpush1.msra.mxu0 0.0
    %230 = vmatprep.subr.mxu0 0.0
    %231 = vmatpush1.msra.mxu0 0.0
    %232 = vmatprep.subr.mxu0 0.0
    %233 = vmatpush1.msra.mxu0 0.0
    %234 = vmatprep.subr.mxu0 0.0
    %235 = vmatpush1.msra.mxu0 0.0
    %236 = vmatprep.subr.mxu0 0.0
    %237 = vmatpush1.msra.mxu0 0.0
    %238 = vmatprep.subr.mxu0 0.0
    %239 = vmatpush1.msra.mxu0 0.0
    %240 = vmatprep.subr.mxu0 0.0
    %241 = vmatpush1.msra.mxu0 0.0
    %242 = vmatprep.subr.mxu0 0.0
    %243 = vmatpush1.msra.mxu0 0.0
    %244 = vmatprep.subr.mxu0 0.0
    %245 = vmatpush1.msra.mxu0 0.0
    %246 = vmatprep.subr.mxu0 0.0
    %247 = vmatpush1.msra.mxu0 0.0
    %248 = vmatprep.subr.mxu0 0.0
    %249 = vmatpush1.msra.mxu0 0.0
    %250 = vmatprep.subr.mxu0 0.0
    %251 = vmatpush1.msra.mxu0 0.0
    %252 = vmatprep.subr.mxu0 0.0
    %253 = vmatpush1.msra.mxu0 0.0
    %254 = vmatprep.subr.mxu0 0.0
    %255 = vmatpush1.msra.mxu0 0.0
    %256 = vmatprep.subr.mxu0 0.0
    %257 = vmatpush1.msra.mxu0 0.0
    %258 = vmatprep.subr.mxu0 0.0
    %259 = vmatpush1.msra.mxu0 0.0
    %260 = vmatprep.subr.mxu0 0.0
    %261 = vmatpush1.msra.mxu0 0.0
    %262 = vmatprep.subr.mxu0 0.0
    %263 = vmatpush1.msra.mxu0 0.0
    %264 = vmatprep.subr.mxu0 0.0
    %265 = vmatpush1.msra.mxu0 0.0
    %266 = vmatprep.subr.mxu0 0.0
    %267 = vmatpush1.msra.mxu0 0.0
    %268 = vmatprep.subr.mxu0 0.0
    %269 = vmatpush1.msra.mxu0 0.0
    %270 = vmatprep.mubr.f32.mxu0 0.0
    %271 = vmatmul.mubr.f32.gmra.mrb[0].mxu0 %v204
    %v272 = vpop.f32.mrb[0].mxu0
    %v273 = vadd.f32 0.0, %v272
    %v274 = vpop.f32.mrb[0].mxu0
    %275 = vdwg.mxu0
    %v276 = vmul.f32 %v200, %v200
    %v277 = vmul.f32 %v201, %v201
    %278 = vmatprep.subr.mxu0 0.0
    %279 = vmatpush1.msra.mxu0 %v276
    %280 = vmatprep.subr.mxu0 0.0
    %281 = vmatpush1.msra.mxu0 %v277
    %282 = vmatprep.subr.mxu0 0.0
    %283 = vmatpush1.msra.mxu0 0.0
    %284 = vmatprep.subr.mxu0 0.0
    %285 = vmatpush1.msra.mxu0 0.0
    %286 = vmatprep.subr.mxu0 0.0
    %287 = vmatpush1.msra.mxu0 0.0
    %288 = vmatprep.subr.mxu0 0.0
    %289 = vmatpush1.msra.mxu0 0.0
    %290 = vmatprep.subr.mxu0 0.0
    %291 = vmatpush1.msra.mxu0 0.0
    %292 = vmatprep.subr.mxu0 0.0
    %293 = vmatpush1.msra.mxu0 0.0
    %294 = vmatprep.subr.mxu0 0.0
    %295 = vmatpush1.msra.mxu0 0.0
    %296 = vmatprep.subr.mxu0 0.0
    %297 = vmatpush1.msra.mxu0 0.0
    %298 = vmatprep.subr.mxu0 0.0
    %299 = vmatpush1.msra.mxu0 0.0
    %300 = vmatprep.subr.mxu0 0.0
    %301 = vmatpush1.msra.mxu0 0.0
    %302 = vmatprep.subr.mxu0 0.0
    %303 = vmatpush1.msra.mxu0 0.0
    %304 = vmatprep.subr.mxu0 0.0
    %305 = vmatpush1.msra.mxu0 0.0
    %306 = vmatprep.subr.mxu0 0.0
    %307 = vmatpush1.msra.mxu0 0.0
    %308 = vmatprep.subr.mxu0 0.0
    %309 = vmatpush1.msra.mxu0 0.0
    %310 = vmatprep.subr.mxu0 0.0
    %311 = vmatpush1.msra.mxu0 0.0
    %312 = vmatprep.subr.mxu0 0.0
    %313 = vmatpush1.msra.mxu0 0.0
    %314 = vmatprep.subr.mxu0 0.0
    %315 = vmatpush1.msra.mxu0 0.0
    %316 = vmatprep.subr.mxu0 0.0
    %317 = vmatpush1.msra.mxu0 0.0
    %318 = vmatprep.subr.mxu0 0.0
    %319 = vmatpush1.msra.mxu0 0.0
    %320 = vmatprep.subr.mxu0 0.0
    %321 = vmatpush1.msra.mxu0 0.0
    %322 = vmatprep.subr.mxu0 0.0
    %323 = vmatpush1.msra.mxu0 0.0
    %324 = vmatprep.subr.mxu0 0.0
    %325 = vmatpush1.msra.mxu0 0.0
    %326 = vmatprep.subr.mxu0 0.0
    %327 = vmatpush1.msra.mxu0 0.0
    %328 = vmatprep.subr.mxu0 0.0
    %329 = vmatpush1.msra.mxu0 0.0
    %330 = vmatprep.subr.mxu0 0.0
    %331 = vmatpush1.msra.mxu0 0.0
    %332 = vmatprep.subr.mxu0 0.0
    %333 = vmatpush1.msra.mxu0 0.0
    %334 = vmatprep.subr.mxu0 0.0
    %335 = vmatpush1.msra.mxu0 0.0
    %336 = vmatprep.subr.mxu0 0.0
    %337 = vmatpush1.msra.mxu0 0.0
    %338 = vmatprep.subr.mxu0 0.0
    %339 = vmatpush1.msra.mxu0 0.0
    %340 = vmatprep.subr.mxu0 0.0
    %341 = vmatpush1.msra.mxu0 0.0
    %342 = vmatprep.mubr.f32.mxu0 0.0
    %343 = vmatmul.mubr.f32.gmra.mrb[0].mxu0 %v204
    %v344 = vpop.f32.mrb[0].mxu0
    %v345 = vadd.f32 0.0, %v344
    %v346 = vpop.f32.mrb[0].mxu0
    %347 = vdwg.mxu0
    %v348 = vmul.f32 %v273, 0.0625
    %v349 = vmul.f32 %v345, 0.0625
    %v350 = vmul.f32 %v348, %v348
    %v351 = vsub.f32 %v349, %v350
    %v352 = vmax.f32 %v351, 0.0
    %v353 = vlaneseq
    %v354 = vshrl.u32 %v353, 7
    %v355 = vsub.s32 0, %v354
    %v356 = vrot.slane %v348, %v355
    %v357 = vsub.f32 %v200, %v356
    %v358 = vsub.f32 %v201, %v356
    %v359 = vadd.f32 %v352, 1e-05
    %v360 = vrsqrt.pop %v359
    %v361 = vlaneseq
    %v362 = vshrl.u32 %v361, 7
    %v363 = vsub.s32 0, %v362
    %v364 = vrot.slane %v360, %v363
    %v365 = vmul.f32 %v357, %v364
    %v366 = vmul.f32 %v358, %v364
    %v367 = vlaneseq
    %v368 = vshrl.u32 %v367, 7
    %v369 = vsub.s32 0, %v368
    %v370 = vrot.slane %v194, %v369
    %v371 = vmul.f32 %v365, %v370
    %v372 = vmul.f32 %v366, %v370
    %v373 = vlaneseq
    %v374 = vshrl.u32 %v373, 7
    %v375 = vsub.s32 0, %v374
    %v376 = vrot.slane %v195, %v375
    %v377 = vadd.f32 %v371, %v376
    %v378 = vadd.f32 %v372, %v376
    %v379 = vmax.f32 %v377, 0.0
    %v380 = vmax.f32 %v378, 0.0
    %v381 = vpack.c.bf16 %v380, %v379
    %v382 = vld [vmem:[#allocation2] sm:$0xf]
    %v383 = vld [vmem:[#allocation2 + $0x4] sm:$0xf]
    %v384 = vld [vmem:[#allocation2 + $0x8] sm:$0xf]
    %v385 = vld [vmem:[#allocation2 + $0xc] sm:$0xf]
    %v390 = vunpack.c.l.b16 %v382
    %v391 = vunpack.c.l.b16 %v383
    %v392 = vunpack.c.l.b16 %v384
    %v393 = vunpack.c.l.b16 %v385
    %v394 = vpack.c.b16 %v391, %v390
    %v395 = vpack.c.b16 %v393, %v392
    %vm398 = vcmask 261120
    %v400 = vsel %vm398, %v381, 0
    %402 = vmatprep.subr.bf16.mxu0 0
    %403 = vmatpush1.bf16.msra.mxu0 %v394
    %404 = vmatprep.subr.bf16.mxu0 0
    %405 = vmatpush1.bf16.msra.mxu0 %v395
    %406 = vmatprep.subr.bf16.mxu0 0
    %407 = vmatpush1.bf16.msra.mxu0 0
    %408 = vmatprep.subr.bf16.mxu0 0
    %409 = vmatpush1.bf16.msra.mxu0 0
    %410 = vmatprep.subr.bf16.mxu0 0
    %411 = vmatpush1.bf16.msra.mxu0 0
    %412 = vmatprep.subr.bf16.mxu0 0
    %413 = vmatpush1.bf16.msra.mxu0 0
    %414 = vmatprep.subr.bf16.mxu0 0
    %415 = vmatpush1.bf16.msra.mxu0 0
    %416 = vmatprep.subr.bf16.mxu0 0
    %417 = vmatpush1.bf16.msra.mxu0 0
    %418 = vmatprep.subr.bf16.mxu0 0
    %419 = vmatpush1.bf16.msra.mxu0 0
    %420 = vmatprep.subr.bf16.mxu0 0
    %421 = vmatpush1.bf16.msra.mxu0 0
    %422 = vmatprep.subr.bf16.mxu0 0
    %423 = vmatpush1.bf16.msra.mxu0 0
    %424 = vmatprep.subr.bf16.mxu0 0
    %425 = vmatpush1.bf16.msra.mxu0 0
    %426 = vmatprep.subr.bf16.mxu0 0
    %427 = vmatpush1.bf16.msra.mxu0 0
    %428 = vmatprep.subr.bf16.mxu0 0
    %429 = vmatpush1.bf16.msra.mxu0 0
    %430 = vmatprep.subr.bf16.mxu0 0
    %431 = vmatpush1.bf16.msra.mxu0 0
    %432 = vmatprep.subr.bf16.mxu0 0
    %433 = vmatpush1.bf16.msra.mxu0 0
    %434 = vmatprep.mubr.bf16.mxu0 0
    %435 = vmatmul.mubr.bf16.gmra.mrb[0].mxu0 %v400
    %v436 = vpop.f32.mrb[0].mxu0
    %v437 = vadd.f32 0.0, %v436
    %v438 = vpop.f32.mrb[0].mxu0
    %v439 = vpop.f32.mrb[0].mxu0
    %v440 = vadd.f32 0.0, %v439
    %v441 = vpop.f32.mrb[0].mxu0
    %442 = vdwg.mxu0
    %v443 = vld [vmem:[%s6 + $0x2] sm:$0x1]
    %v444 = vld [vmem:[%s6 + $0x3] sm:$0x1]
    %v445 = vlaneseq
    %v446 = vshrl.u32 %v445, 7
    %v447 = vsub.s32 0, %v446
    %v448 = vrot.slane %v437, %v447
    %v449 = vsub.f32 %v437, %v448
    %v450 = vsub.f32 %v440, %v448
    %451 = vmatprep.subr.mxu0 0.0
    %452 = vmatpush1.msra.mxu0 %v449
    %453 = vmatprep.subr.mxu0 0.0
    %454 = vmatpush1.msra.mxu0 %v450
    %455 = vmatprep.subr.mxu0 0.0
    %456 = vmatpush1.msra.mxu0 0.0
    %457 = vmatprep.subr.mxu0 0.0
    %458 = vmatpush1.msra.mxu0 0.0
    %459 = vmatprep.subr.mxu0 0.0
    %460 = vmatpush1.msra.mxu0 0.0
    %461 = vmatprep.subr.mxu0 0.0
    %462 = vmatpush1.msra.mxu0 0.0
    %463 = vmatprep.subr.mxu0 0.0
    %464 = vmatpush1.msra.mxu0 0.0
    %465 = vmatprep.subr.mxu0 0.0
    %466 = vmatpush1.msra.mxu0 0.0
    %467 = vmatprep.subr.mxu0 0.0
    %468 = vmatpush1.msra.mxu0 0.0
    %469 = vmatprep.subr.mxu0 0.0
    %470 = vmatpush1.msra.mxu0 0.0
    %471 = vmatprep.subr.mxu0 0.0
    %472 = vmatpush1.msra.mxu0 0.0
    %473 = vmatprep.subr.mxu0 0.0
    %474 = vmatpush1.msra.mxu0 0.0
    %475 = vmatprep.subr.mxu0 0.0
    %476 = vmatpush1.msra.mxu0 0.0
    %477 = vmatprep.subr.mxu0 0.0
    %478 = vmatpush1.msra.mxu0 0.0
    %479 = vmatprep.subr.mxu0 0.0
    %480 = vmatpush1.msra.mxu0 0.0
    %481 = vmatprep.subr.mxu0 0.0
    %482 = vmatpush1.msra.mxu0 0.0
    %483 = vmatprep.subr.mxu0 0.0
    %484 = vmatpush1.msra.mxu0 0.0
    %485 = vmatprep.subr.mxu0 0.0
    %486 = vmatpush1.msra.mxu0 0.0
    %487 = vmatprep.subr.mxu0 0.0
    %488 = vmatpush1.msra.mxu0 0.0
    %489 = vmatprep.subr.mxu0 0.0
    %490 = vmatpush1.msra.mxu0 0.0
    %491 = vmatprep.subr.mxu0 0.0
    %492 = vmatpush1.msra.mxu0 0.0
    %493 = vmatprep.subr.mxu0 0.0
    %494 = vmatpush1.msra.mxu0 0.0
    %495 = vmatprep.subr.mxu0 0.0
    %496 = vmatpush1.msra.mxu0 0.0
    %497 = vmatprep.subr.mxu0 0.0
    %498 = vmatpush1.msra.mxu0 0.0
    %499 = vmatprep.subr.mxu0 0.0
    %500 = vmatpush1.msra.mxu0 0.0
    %501 = vmatprep.subr.mxu0 0.0
    %502 = vmatpush1.msra.mxu0 0.0
    %503 = vmatprep.subr.mxu0 0.0
    %504 = vmatpush1.msra.mxu0 0.0
    %505 = vmatprep.subr.mxu0 0.0
    %506 = vmatpush1.msra.mxu0 0.0
    %507 = vmatprep.subr.mxu0 0.0
    %508 = vmatpush1.msra.mxu0 0.0
    %509 = vmatprep.subr.mxu0 0.0
    %510 = vmatpush1.msra.mxu0 0.0
    %511 = vmatprep.subr.mxu0 0.0
    %512 = vmatpush1.msra.mxu0 0.0
    %513 = vmatprep.subr.mxu0 0.0
    %514 = vmatpush1.msra.mxu0 0.0
    %515 = vmatprep.mubr.f32.mxu0 0.0
    %516 = vmatmul.mubr.f32.gmra.mrb[0].mxu0 %v204
    %v517 = vpop.f32.mrb[0].mxu0
    %v518 = vadd.f32 0.0, %v517
    %v519 = vpop.f32.mrb[0].mxu0
    %520 = vdwg.mxu0
    %v521 = vmul.f32 %v449, %v449
    %v522 = vmul.f32 %v450, %v450
    %523 = vmatprep.subr.mxu0 0.0
    %524 = vmatpush1.msra.mxu0 %v521
    %525 = vmatprep.subr.mxu0 0.0
    %526 = vmatpush1.msra.mxu0 %v522
    %527 = vmatprep.subr.mxu0 0.0
    %528 = vmatpush1.msra.mxu0 0.0
    %529 = vmatprep.subr.mxu0 0.0
    %530 = vmatpush1.msra.mxu0 0.0
    %531 = vmatprep.subr.mxu0 0.0
    %532 = vmatpush1.msra.mxu0 0.0
    %533 = vmatprep.subr.mxu0 0.0
    %534 = vmatpush1.msra.mxu0 0.0
    %535 = vmatprep.subr.mxu0 0.0
    %536 = vmatpush1.msra.mxu0 0.0
    %537 = vmatprep.subr.mxu0 0.0
    %538 = vmatpush1.msra.mxu0 0.0
    %539 = vmatprep.subr.mxu0 0.0
    %540 = vmatpush1.msra.mxu0 0.0
    %541 = vmatprep.subr.mxu0 0.0
    %542 = vmatpush1.msra.mxu0 0.0
    %543 = vmatprep.subr.mxu0 0.0
    %544 = vmatpush1.msra.mxu0 0.0
    %545 = vmatprep.subr.mxu0 0.0
    %546 = vmatpush1.msra.mxu0 0.0
    %547 = vmatprep.subr.mxu0 0.0
    %548 = vmatpush1.msra.mxu0 0.0
    %549 = vmatprep.subr.mxu0 0.0
    %550 = vmatpush1.msra.mxu0 0.0
    %551 = vmatprep.subr.mxu0 0.0
    %552 = vmatpush1.msra.mxu0 0.0
    %553 = vmatprep.subr.mxu0 0.0
    %554 = vmatpush1.msra.mxu0 0.0
    %555 = vmatprep.subr.mxu0 0.0
    %556 = vmatpush1.msra.mxu0 0.0
    %557 = vmatprep.subr.mxu0 0.0
    %558 = vmatpush1.msra.mxu0 0.0
    %559 = vmatprep.subr.mxu0 0.0
    %560 = vmatpush1.msra.mxu0 0.0
    %561 = vmatprep.subr.mxu0 0.0
    %562 = vmatpush1.msra.mxu0 0.0
    %563 = vmatprep.subr.mxu0 0.0
    %564 = vmatpush1.msra.mxu0 0.0
    %565 = vmatprep.subr.mxu0 0.0
    %566 = vmatpush1.msra.mxu0 0.0
    %567 = vmatprep.subr.mxu0 0.0
    %568 = vmatpush1.msra.mxu0 0.0
    %569 = vmatprep.subr.mxu0 0.0
    %570 = vmatpush1.msra.mxu0 0.0
    %571 = vmatprep.subr.mxu0 0.0
    %572 = vmatpush1.msra.mxu0 0.0
    %573 = vmatprep.subr.mxu0 0.0
    %574 = vmatpush1.msra.mxu0 0.0
    %575 = vmatprep.subr.mxu0 0.0
    %576 = vmatpush1.msra.mxu0 0.0
    %577 = vmatprep.subr.mxu0 0.0
    %578 = vmatpush1.msra.mxu0 0.0
    %579 = vmatprep.subr.mxu0 0.0
    %580 = vmatpush1.msra.mxu0 0.0
    %581 = vmatprep.subr.mxu0 0.0
    %582 = vmatpush1.msra.mxu0 0.0
    %583 = vmatprep.subr.mxu0 0.0
    %584 = vmatpush1.msra.mxu0 0.0
    %585 = vmatprep.subr.mxu0 0.0
    %586 = vmatpush1.msra.mxu0 0.0
    %587 = vmatprep.mubr.f32.mxu0 0.0
    %588 = vmatmul.mubr.f32.gmra.mrb[0].mxu0 %v204
    %v589 = vpop.f32.mrb[0].mxu0
    %v590 = vadd.f32 0.0, %v589
    %v591 = vpop.f32.mrb[0].mxu0
    %592 = vdwg.mxu0
    %v593 = vmul.f32 %v518, 0.0625
    %v594 = vmul.f32 %v590, 0.0625
    %v595 = vmul.f32 %v593, %v593
    %v596 = vsub.f32 %v594, %v595
    %v597 = vmax.f32 %v596, 0.0
    %v598 = vlaneseq
    %v599 = vshrl.u32 %v598, 7
    %v600 = vsub.s32 0, %v599
    %v601 = vrot.slane %v593, %v600
    %v602 = vsub.f32 %v449, %v601
    %v603 = vsub.f32 %v450, %v601
    %v604 = vadd.f32 %v597, 1e-05
    %v605 = vrsqrt.pop %v604
    %v606 = vlaneseq
    %v607 = vshrl.u32 %v606, 7
    %v608 = vsub.s32 0, %v607
    %v609 = vrot.slane %v605, %v608
    %v610 = vmul.f32 %v602, %v609
    %v611 = vmul.f32 %v603, %v609
    %v612 = vlaneseq
    %v613 = vshrl.u32 %v612, 7
    %v614 = vsub.s32 0, %v613
    %v615 = vrot.slane %v443, %v614
    %v616 = vmul.f32 %v610, %v615
    %v617 = vmul.f32 %v611, %v615
    %v618 = vlaneseq
    %v619 = vshrl.u32 %v618, 7
    %v620 = vsub.s32 0, %v619
    %v621 = vrot.slane %v444, %v620
    %v622 = vadd.f32 %v616, %v621
    %v623 = vadd.f32 %v617, %v621
    %v624 = vmax.f32 %v622, 0.0
    %v625 = vmax.f32 %v623, 0.0
    %v626 = vpack.c.bf16 %v625, %v624
    %s627 = scalar_lea.vmem [#allocation2], 16
    %v628 = vld [vmem:[%s627] sm:$0xf]
    %v629 = vld [vmem:[%s627 + $0x4] sm:$0xf]
    %v630 = vld [vmem:[%s627 + $0x8] sm:$0xf]
    %v631 = vld [vmem:[%s627 + $0xc] sm:$0xf]
    %v636 = vunpack.c.l.b16 %v628
    %v637 = vunpack.c.l.b16 %v629
    %v638 = vunpack.c.l.b16 %v630
    %v639 = vunpack.c.l.b16 %v631
    %v640 = vpack.c.b16 %v637, %v636
    %v641 = vpack.c.b16 %v639, %v638
    %v645 = vsel %vm398, %v626, 0
    %647 = vmatprep.subr.bf16.mxu0 0
    %648 = vmatpush1.bf16.msra.mxu0 %v640
    %649 = vmatprep.subr.bf16.mxu0 0
    %650 = vmatpush1.bf16.msra.mxu0 %v641
    %651 = vmatprep.subr.bf16.mxu0 0
    %652 = vmatpush1.bf16.msra.mxu0 0
    %653 = vmatprep.subr.bf16.mxu0 0
    %654 = vmatpush1.bf16.msra.mxu0 0
    %655 = vmatprep.subr.bf16.mxu0 0
    %656 = vmatpush1.bf16.msra.mxu0 0
    %657 = vmatprep.subr.bf16.mxu0 0
    %658 = vmatpush1.bf16.msra.mxu0 0
    %659 = vmatprep.subr.bf16.mxu0 0
    %660 = vmatpush1.bf16.msra.mxu0 0
    %661 = vmatprep.subr.bf16.mxu0 0
    %662 = vmatpush1.bf16.msra.mxu0 0
    %663 = vmatprep.subr.bf16.mxu0 0
    %664 = vmatpush1.bf16.msra.mxu0 0
    %665 = vmatprep.subr.bf16.mxu0 0
    %666 = vmatpush1.bf16.msra.mxu0 0
    %667 = vmatprep.subr.bf16.mxu0 0
    %668 = vmatpush1.bf16.msra.mxu0 0
    %669 = vmatprep.subr.bf16.mxu0 0
    %670 = vmatpush1.bf16.msra.mxu0 0
    %671 = vmatprep.subr.bf16.mxu0 0
    %672 = vmatpush1.bf16.msra.mxu0 0
    %673 = vmatprep.subr.bf16.mxu0 0
    %674 = vmatpush1.bf16.msra.mxu0 0
    %675 = vmatprep.subr.bf16.mxu0 0
    %676 = vmatpush1.bf16.msra.mxu0 0
    %677 = vmatprep.subr.bf16.mxu0 0
    %678 = vmatpush1.bf16.msra.mxu0 0
    %679 = vmatprep.mubr.bf16.mxu0 0
    %680 = vmatmul.mubr.bf16.gmra.mrb[0].mxu0 %v645
    %v681 = vpop.f32.mrb[0].mxu0
    %v682 = vadd.f32 0.0, %v681
    %v683 = vpop.f32.mrb[0].mxu0
    %v684 = vpop.f32.mrb[0].mxu0
    %v685 = vadd.f32 0.0, %v684
    %v686 = vpop.f32.mrb[0].mxu0
    %687 = vdwg.mxu0
    %v688 = vld [vmem:[%s6 + $0x4] sm:$0x1]
    %v689 = vld [vmem:[%s6 + $0x5] sm:$0x1]
    %v690 = vlaneseq
    %v691 = vshrl.u32 %v690, 7
    %v692 = vsub.s32 0, %v691
    %v693 = vrot.slane %v682, %v692
    %v694 = vsub.f32 %v682, %v693
    %v695 = vsub.f32 %v685, %v693
    %696 = vmatprep.subr.mxu0 0.0
    %697 = vmatpush1.msra.mxu0 %v694
    %698 = vmatprep.subr.mxu0 0.0
    %699 = vmatpush1.msra.mxu0 %v695
    %700 = vmatprep.subr.mxu0 0.0
    %701 = vmatpush1.msra.mxu0 0.0
    %702 = vmatprep.subr.mxu0 0.0
    %703 = vmatpush1.msra.mxu0 0.0
    %704 = vmatprep.subr.mxu0 0.0
    %705 = vmatpush1.msra.mxu0 0.0
    %706 = vmatprep.subr.mxu0 0.0
    %707 = vmatpush1.msra.mxu0 0.0
    %708 = vmatprep.subr.mxu0 0.0
    %709 = vmatpush1.msra.mxu0 0.0
    %710 = vmatprep.subr.mxu0 0.0
    %711 = vmatpush1.msra.mxu0 0.0
    %712 = vmatprep.subr.mxu0 0.0
    %713 = vmatpush1.msra.mxu0 0.0
    %714 = vmatprep.subr.mxu0 0.0
    %715 = vmatpush1.msra.mxu0 0.0
    %716 = vmatprep.subr.mxu0 0.0
    %717 = vmatpush1.msra.mxu0 0.0
    %718 = vmatprep.subr.mxu0 0.0
    %719 = vmatpush1.msra.mxu0 0.0
    %720 = vmatprep.subr.mxu0 0.0
    %721 = vmatpush1.msra.mxu0 0.0
    %722 = vmatprep.subr.mxu0 0.0
    %723 = vmatpush1.msra.mxu0 0.0
    %724 = vmatprep.subr.mxu0 0.0
    %725 = vmatpush1.msra.mxu0 0.0
    %726 = vmatprep.subr.mxu0 0.0
    %727 = vmatpush1.msra.mxu0 0.0
    %728 = vmatprep.subr.mxu0 0.0
    %729 = vmatpush1.msra.mxu0 0.0
    %730 = vmatprep.subr.mxu0 0.0
    %731 = vmatpush1.msra.mxu0 0.0
    %732 = vmatprep.subr.mxu0 0.0
    %733 = vmatpush1.msra.mxu0 0.0
    %734 = vmatprep.subr.mxu0 0.0
    %735 = vmatpush1.msra.mxu0 0.0
    %736 = vmatprep.subr.mxu0 0.0
    %737 = vmatpush1.msra.mxu0 0.0
    %738 = vmatprep.subr.mxu0 0.0
    %739 = vmatpush1.msra.mxu0 0.0
    %740 = vmatprep.subr.mxu0 0.0
    %741 = vmatpush1.msra.mxu0 0.0
    %742 = vmatprep.subr.mxu0 0.0
    %743 = vmatpush1.msra.mxu0 0.0
    %744 = vmatprep.subr.mxu0 0.0
    %745 = vmatpush1.msra.mxu0 0.0
    %746 = vmatprep.subr.mxu0 0.0
    %747 = vmatpush1.msra.mxu0 0.0
    %748 = vmatprep.subr.mxu0 0.0
    %749 = vmatpush1.msra.mxu0 0.0
    %750 = vmatprep.subr.mxu0 0.0
    %751 = vmatpush1.msra.mxu0 0.0
    %752 = vmatprep.subr.mxu0 0.0
    %753 = vmatpush1.msra.mxu0 0.0
    %754 = vmatprep.subr.mxu0 0.0
    %755 = vmatpush1.msra.mxu0 0.0
    %756 = vmatprep.subr.mxu0 0.0
    %757 = vmatpush1.msra.mxu0 0.0
    %758 = vmatprep.subr.mxu0 0.0
    %759 = vmatpush1.msra.mxu0 0.0
    %760 = vmatprep.mubr.f32.mxu0 0.0
    %761 = vmatmul.mubr.f32.gmra.mrb[0].mxu0 %v204
    %v762 = vpop.f32.mrb[0].mxu0
    %v763 = vadd.f32 0.0, %v762
    %v764 = vpop.f32.mrb[0].mxu0
    %765 = vdwg.mxu0
    %v766 = vmul.f32 %v694, %v694
    %v767 = vmul.f32 %v695, %v695
    %768 = vmatprep.subr.mxu0 0.0
    %769 = vmatpush1.msra.mxu0 %v766
    %770 = vmatprep.subr.mxu0 0.0
    %771 = vmatpush1.msra.mxu0 %v767
    %772 = vmatprep.subr.mxu0 0.0
    %773 = vmatpush1.msra.mxu0 0.0
    %774 = vmatprep.subr.mxu0 0.0
    %775 = vmatpush1.msra.mxu0 0.0
    %776 = vmatprep.subr.mxu0 0.0
    %777 = vmatpush1.msra.mxu0 0.0
    %778 = vmatprep.subr.mxu0 0.0
    %779 = vmatpush1.msra.mxu0 0.0
    %780 = vmatprep.subr.mxu0 0.0
    %781 = vmatpush1.msra.mxu0 0.0
    %782 = vmatprep.subr.mxu0 0.0
    %783 = vmatpush1.msra.mxu0 0.0
    %784 = vmatprep.subr.mxu0 0.0
    %785 = vmatpush1.msra.mxu0 0.0
    %786 = vmatprep.subr.mxu0 0.0
    %787 = vmatpush1.msra.mxu0 0.0
    %788 = vmatprep.subr.mxu0 0.0
    %789 = vmatpush1.msra.mxu0 0.0
    %790 = vmatprep.subr.mxu0 0.0
    %791 = vmatpush1.msra.mxu0 0.0
    %792 = vmatprep.subr.mxu0 0.0
    %793 = vmatpush1.msra.mxu0 0.0
    %794 = vmatprep.subr.mxu0 0.0
    %795 = vmatpush1.msra.mxu0 0.0
    %796 = vmatprep.subr.mxu0 0.0
    %797 = vmatpush1.msra.mxu0 0.0
    %798 = vmatprep.subr.mxu0 0.0
    %799 = vmatpush1.msra.mxu0 0.0
    %800 = vmatprep.subr.mxu0 0.0
    %801 = vmatpush1.msra.mxu0 0.0
    %802 = vmatprep.subr.mxu0 0.0
    %803 = vmatpush1.msra.mxu0 0.0
    %804 = vmatprep.subr.mxu0 0.0
    %805 = vmatpush1.msra.mxu0 0.0
    %806 = vmatprep.subr.mxu0 0.0
    %807 = vmatpush1.msra.mxu0 0.0
    %808 = vmatprep.subr.mxu0 0.0
    %809 = vmatpush1.msra.mxu0 0.0
    %810 = vmatprep.subr.mxu0 0.0
    %811 = vmatpush1.msra.mxu0 0.0
    %812 = vmatprep.subr.mxu0 0.0
    %813 = vmatpush1.msra.mxu0 0.0
    %814 = vmatprep.subr.mxu0 0.0
    %815 = vmatpush1.msra.mxu0 0.0
    %816 = vmatprep.subr.mxu0 0.0
    %817 = vmatpush1.msra.mxu0 0.0
    %818 = vmatprep.subr.mxu0 0.0
    %819 = vmatpush1.msra.mxu0 0.0
    %820 = vmatprep.subr.mxu0 0.0
    %821 = vmatpush1.msra.mxu0 0.0
    %822 = vmatprep.subr.mxu0 0.0
    %823 = vmatpush1.msra.mxu0 0.0
    %824 = vmatprep.subr.mxu0 0.0
    %825 = vmatpush1.msra.mxu0 0.0
    %826 = vmatprep.subr.mxu0 0.0
    %827 = vmatpush1.msra.mxu0 0.0
    %828 = vmatprep.subr.mxu0 0.0
    %829 = vmatpush1.msra.mxu0 0.0
    %830 = vmatprep.subr.mxu0 0.0
    %831 = vmatpush1.msra.mxu0 0.0
    %832 = vmatprep.mubr.f32.mxu0 0.0
    %833 = vmatmul.mubr.f32.gmra.mrb[0].mxu0 %v204
    %v834 = vpop.f32.mrb[0].mxu0
    %v835 = vadd.f32 0.0, %v834
    %v836 = vpop.f32.mrb[0].mxu0
    %837 = vdwg.mxu0
    %v838 = vmul.f32 %v763, 0.0625
    %v839 = vmul.f32 %v835, 0.0625
    %v840 = vmul.f32 %v838, %v838
    %v841 = vsub.f32 %v839, %v840
    %v842 = vmax.f32 %v841, 0.0
    %v843 = vlaneseq
    %v844 = vshrl.u32 %v843, 7
    %v845 = vsub.s32 0, %v844
    %v846 = vrot.slane %v838, %v845
    %v847 = vsub.f32 %v694, %v846
    %v848 = vsub.f32 %v695, %v846
    %v849 = vadd.f32 %v842, 1e-05
    %v850 = vrsqrt.pop %v849
    %v851 = vlaneseq
    %v852 = vshrl.u32 %v851, 7
    %v853 = vsub.s32 0, %v852
    %v854 = vrot.slane %v850, %v853
    %v855 = vmul.f32 %v847, %v854
    %v856 = vmul.f32 %v848, %v854
    %v857 = vlaneseq
    %v858 = vshrl.u32 %v857, 7
    %v859 = vsub.s32 0, %v858
    %v860 = vrot.slane %v688, %v859
    %v861 = vmul.f32 %v855, %v860
    %v862 = vmul.f32 %v856, %v860
    %v863 = vlaneseq
    %v864 = vshrl.u32 %v863, 7
    %v865 = vsub.s32 0, %v864
    %v866 = vrot.slane %v689, %v865
    %v867 = vadd.f32 %v861, %v866
    %v868 = vadd.f32 %v862, %v866
    %v869 = vmax.f32 %v867, 0.0
    %v870 = vmax.f32 %v868, 0.0
    %v871 = vpack.c.bf16 %v870, %v869
    %s872 = scalar_lea.vmem [#allocation2], 32
    %v873 = vld [vmem:[%s872] sm:$0xf]
    %v874 = vld [vmem:[%s872 + $0x4] sm:$0xf]
    %v875 = vld [vmem:[%s872 + $0x8] sm:$0xf]
    %v876 = vld [vmem:[%s872 + $0xc] sm:$0xf]
    %v881 = vunpack.c.l.b16 %v873
    %v882 = vunpack.c.l.b16 %v874
    %v883 = vunpack.c.l.b16 %v875
    %v884 = vunpack.c.l.b16 %v876
    %v885 = vpack.c.b16 %v882, %v881
    %v886 = vpack.c.b16 %v884, %v883
    %v890 = vsel %vm398, %v871, 0
    %892 = vmatprep.subr.bf16.mxu0 0
    %893 = vmatpush1.bf16.msra.mxu0 %v885
    %894 = vmatprep.subr.bf16.mxu0 0
    %895 = vmatpush1.bf16.msra.mxu0 %v886
    %896 = vmatprep.subr.bf16.mxu0 0
    %897 = vmatpush1.bf16.msra.mxu0 0
    %898 = vmatprep.subr.bf16.mxu0 0
    %899 = vmatpush1.bf16.msra.mxu0 0
    %900 = vmatprep.subr.bf16.mxu0 0
    %901 = vmatpush1.bf16.msra.mxu0 0
    %902 = vmatprep.subr.bf16.mxu0 0
    %903 = vmatpush1.bf16.msra.mxu0 0
    %904 = vmatprep.subr.bf16.mxu0 0
    %905 = vmatpush1.bf16.msra.mxu0 0
    %906 = vmatprep.subr.bf16.mxu0 0
    %907 = vmatpush1.bf16.msra.mxu0 0
    %908 = vmatprep.subr.bf16.mxu0 0
    %909 = vmatpush1.bf16.msra.mxu0 0
    %910 = vmatprep.subr.bf16.mxu0 0
    %911 = vmatpush1.bf16.msra.mxu0 0
    %912 = vmatprep.subr.bf16.mxu0 0
    %913 = vmatpush1.bf16.msra.mxu0 0
    %914 = vmatprep.subr.bf16.mxu0 0
    %915 = vmatpush1.bf16.msra.mxu0 0
    %916 = vmatprep.subr.bf16.mxu0 0
    %917 = vmatpush1.bf16.msra.mxu0 0
    %918 = vmatprep.subr.bf16.mxu0 0
    %919 = vmatpush1.bf16.msra.mxu0 0
    %920 = vmatprep.subr.bf16.mxu0 0
    %921 = vmatpush1.bf16.msra.mxu0 0
    %922 = vmatprep.subr.bf16.mxu0 0
    %923 = vmatpush1.bf16.msra.mxu0 0
    %924 = vmatprep.mubr.bf16.mxu0 0
    %925 = vmatmul.mubr.bf16.gmra.mrb[0].mxu0 %v890
    %v926 = vpop.f32.mrb[0].mxu0
    %v927 = vadd.f32 0.0, %v926
    %v928 = vpop.f32.mrb[0].mxu0
    %v929 = vpop.f32.mrb[0].mxu0
    %v930 = vadd.f32 0.0, %v929
    %v931 = vpop.f32.mrb[0].mxu0
    %932 = vdwg.mxu0
    %v933 = vld [vmem:[%s6 + $0x6] sm:$0x1]
    %v934 = vld [vmem:[%s6 + $0x7] sm:$0x1]
    %v935 = vlaneseq
    %v936 = vshrl.u32 %v935, 7
    %v937 = vsub.s32 0, %v936
    %v938 = vrot.slane %v927, %v937
    %v939 = vsub.f32 %v927, %v938
    %v940 = vsub.f32 %v930, %v938
    %941 = vmatprep.subr.mxu0 0.0
    %942 = vmatpush1.msra.mxu0 %v939
    %943 = vmatprep.subr.mxu0 0.0
    %944 = vmatpush1.msra.mxu0 %v940
    %945 = vmatprep.subr.mxu0 0.0
    %946 = vmatpush1.msra.mxu0 0.0
    %947 = vmatprep.subr.mxu0 0.0
    %948 = vmatpush1.msra.mxu0 0.0
    %949 = vmatprep.subr.mxu0 0.0
    %950 = vmatpush1.msra.mxu0 0.0
    %951 = vmatprep.subr.mxu0 0.0
    %952 = vmatpush1.msra.mxu0 0.0
    %953 = vmatprep.subr.mxu0 0.0
    %954 = vmatpush1.msra.mxu0 0.0
    %955 = vmatprep.subr.mxu0 0.0
    %956 = vmatpush1.msra.mxu0 0.0
    %957 = vmatprep.subr.mxu0 0.0
    %958 = vmatpush1.msra.mxu0 0.0
    %959 = vmatprep.subr.mxu0 0.0
    %960 = vmatpush1.msra.mxu0 0.0
    %961 = vmatprep.subr.mxu0 0.0
    %962 = vmatpush1.msra.mxu0 0.0
    %963 = vmatprep.subr.mxu0 0.0
    %964 = vmatpush1.msra.mxu0 0.0
    %965 = vmatprep.subr.mxu0 0.0
    %966 = vmatpush1.msra.mxu0 0.0
    %967 = vmatprep.subr.mxu0 0.0
    %968 = vmatpush1.msra.mxu0 0.0
    %969 = vmatprep.subr.mxu0 0.0
    %970 = vmatpush1.msra.mxu0 0.0
    %971 = vmatprep.subr.mxu0 0.0
    %972 = vmatpush1.msra.mxu0 0.0
    %973 = vmatprep.subr.mxu0 0.0
    %974 = vmatpush1.msra.mxu0 0.0
    %975 = vmatprep.subr.mxu0 0.0
    %976 = vmatpush1.msra.mxu0 0.0
    %977 = vmatprep.subr.mxu0 0.0
    %978 = vmatpush1.msra.mxu0 0.0
    %979 = vmatprep.subr.mxu0 0.0
    %980 = vmatpush1.msra.mxu0 0.0
    %981 = vmatprep.subr.mxu0 0.0
    %982 = vmatpush1.msra.mxu0 0.0
    %983 = vmatprep.subr.mxu0 0.0
    %984 = vmatpush1.msra.mxu0 0.0
    %985 = vmatprep.subr.mxu0 0.0
    %986 = vmatpush1.msra.mxu0 0.0
    %987 = vmatprep.subr.mxu0 0.0
    %988 = vmatpush1.msra.mxu0 0.0
    %989 = vmatprep.subr.mxu0 0.0
    %990 = vmatpush1.msra.mxu0 0.0
    %991 = vmatprep.subr.mxu0 0.0
    %992 = vmatpush1.msra.mxu0 0.0
    %993 = vmatprep.subr.mxu0 0.0
    %994 = vmatpush1.msra.mxu0 0.0
    %995 = vmatprep.subr.mxu0 0.0
    %996 = vmatpush1.msra.mxu0 0.0
    %997 = vmatprep.subr.mxu0 0.0
    %998 = vmatpush1.msra.mxu0 0.0
    %999 = vmatprep.subr.mxu0 0.0
    %1000 = vmatpush1.msra.mxu0 0.0
    %1001 = vmatprep.subr.mxu0 0.0
    %1002 = vmatpush1.msra.mxu0 0.0
    %1003 = vmatprep.subr.mxu0 0.0
    %1004 = vmatpush1.msra.mxu0 0.0
    %1005 = vmatprep.mubr.f32.mxu0 0.0
    %1006 = vmatmul.mubr.f32.gmra.mrb[0].mxu0 %v204
    %v1007 = vpop.f32.mrb[0].mxu0
    %v1008 = vadd.f32 0.0, %v1007
    %v1009 = vpop.f32.mrb[0].mxu0
    %1010 = vdwg.mxu0
    %v1011 = vmul.f32 %v939, %v939
    %v1012 = vmul.f32 %v940, %v940
    %1013 = vmatprep.subr.mxu0 0.0
    %1014 = vmatpush1.msra.mxu0 %v1011
    %1015 = vmatprep.subr.mxu0 0.0
    %1016 = vmatpush1.msra.mxu0 %v1012
    %1017 = vmatprep.subr.mxu0 0.0
    %1018 = vmatpush1.msra.mxu0 0.0
    %1019 = vmatprep.subr.mxu0 0.0
    %1020 = vmatpush1.msra.mxu0 0.0
    %1021 = vmatprep.subr.mxu0 0.0
    %1022 = vmatpush1.msra.mxu0 0.0
    %1023 = vmatprep.subr.mxu0 0.0
    %1024 = vmatpush1.msra.mxu0 0.0
    %1025 = vmatprep.subr.mxu0 0.0
    %1026 = vmatpush1.msra.mxu0 0.0
    %1027 = vmatprep.subr.mxu0 0.0
    %1028 = vmatpush1.msra.mxu0 0.0
    %1029 = vmatprep.subr.mxu0 0.0
    %1030 = vmatpush1.msra.mxu0 0.0
    %1031 = vmatprep.subr.mxu0 0.0
    %1032 = vmatpush1.msra.mxu0 0.0
    %1033 = vmatprep.subr.mxu0 0.0
    %1034 = vmatpush1.msra.mxu0 0.0
    %1035 = vmatprep.subr.mxu0 0.0
    %1036 = vmatpush1.msra.mxu0 0.0
    %1037 = vmatprep.subr.mxu0 0.0
    %1038 = vmatpush1.msra.mxu0 0.0
    %1039 = vmatprep.subr.mxu0 0.0
    %1040 = vmatpush1.msra.mxu0 0.0
    %1041 = vmatprep.subr.mxu0 0.0
    %1042 = vmatpush1.msra.mxu0 0.0
    %1043 = vmatprep.subr.mxu0 0.0
    %1044 = vmatpush1.msra.mxu0 0.0
    %1045 = vmatprep.subr.mxu0 0.0
    %1046 = vmatpush1.msra.mxu0 0.0
    %1047 = vmatprep.subr.mxu0 0.0
    %1048 = vmatpush1.msra.mxu0 0.0
    %1049 = vmatprep.subr.mxu0 0.0
    %1050 = vmatpush1.msra.mxu0 0.0
    %1051 = vmatprep.subr.mxu0 0.0
    %1052 = vmatpush1.msra.mxu0 0.0
    %1053 = vmatprep.subr.mxu0 0.0
    %1054 = vmatpush1.msra.mxu0 0.0
    %1055 = vmatprep.subr.mxu0 0.0
    %1056 = vmatpush1.msra.mxu0 0.0
    %1057 = vmatprep.subr.mxu0 0.0
    %1058 = vmatpush1.msra.mxu0 0.0
    %1059 = vmatprep.subr.mxu0 0.0
    %1060 = vmatpush1.msra.mxu0 0.0
    %1061 = vmatprep.subr.mxu0 0.0
    %1062 = vmatpush1.msra.mxu0 0.0
    %1063 = vmatprep.subr.mxu0 0.0
    %1064 = vmatpush1.msra.mxu0 0.0
    %1065 = vmatprep.subr.mxu0 0.0
    %1066 = vmatpush1.msra.mxu0 0.0
    %1067 = vmatprep.subr.mxu0 0.0
    %1068 = vmatpush1.msra.mxu0 0.0
    %1069 = vmatprep.subr.mxu0 0.0
    %1070 = vmatpush1.msra.mxu0 0.0
    %1071 = vmatprep.subr.mxu0 0.0
    %1072 = vmatpush1.msra.mxu0 0.0
    %1073 = vmatprep.subr.mxu0 0.0
    %1074 = vmatpush1.msra.mxu0 0.0
    %1075 = vmatprep.subr.mxu0 0.0
    %1076 = vmatpush1.msra.mxu0 0.0
    %1077 = vmatprep.mubr.f32.mxu0 0.0
    %1078 = vmatmul.mubr.f32.gmra.mrb[0].mxu0 %v204
    %v1079 = vpop.f32.mrb[0].mxu0
    %v1080 = vadd.f32 0.0, %v1079
    %v1081 = vpop.f32.mrb[0].mxu0
    %1082 = vdwg.mxu0
    %v1083 = vmul.f32 %v1008, 0.0625
    %v1084 = vmul.f32 %v1080, 0.0625
    %v1085 = vmul.f32 %v1083, %v1083
    %v1086 = vsub.f32 %v1084, %v1085
    %v1087 = vmax.f32 %v1086, 0.0
    %v1088 = vlaneseq
    %v1089 = vshrl.u32 %v1088, 7
    %v1090 = vsub.s32 0, %v1089
    %v1091 = vrot.slane %v1083, %v1090
    %v1092 = vsub.f32 %v939, %v1091
    %v1093 = vsub.f32 %v940, %v1091
    %v1094 = vadd.f32 %v1087, 1e-05
    %v1095 = vrsqrt.pop %v1094
    %v1096 = vlaneseq
    %v1097 = vshrl.u32 %v1096, 7
    %v1098 = vsub.s32 0, %v1097
    %v1099 = vrot.slane %v1095, %v1098
    %v1100 = vmul.f32 %v1092, %v1099
    %v1101 = vmul.f32 %v1093, %v1099
    %v1102 = vlaneseq
    %v1103 = vshrl.u32 %v1102, 7
    %v1104 = vsub.s32 0, %v1103
    %v1105 = vrot.slane %v933, %v1104
    %v1106 = vmul.f32 %v1100, %v1105
    %v1107 = vmul.f32 %v1101, %v1105
    %v1108 = vlaneseq
    %v1109 = vshrl.u32 %v1108, 7
    %v1110 = vsub.s32 0, %v1109
    %v1111 = vrot.slane %v934, %v1110
    %v1112 = vadd.f32 %v1106, %v1111
    %v1113 = vadd.f32 %v1107, %v1111
    %v1114 = vmax.f32 %v1112, 0.0
    %v1115 = vmax.f32 %v1113, 0.0
    %v1116 = vld [vmem:[%s5] sm:$0x1]
    %v1117 = vpack.c.bf16 %v1115, %v1114
    %v1118 = vld [vmem:[%s7] sm:$0x3]
    %1120 = vset.pattern.permute.xlu0 0
    %1121 = vperm.xlu0 %1120, %v1118
    %v1122 = vpop.permute.xlu0 %1121
    %v1125 = vsel %vm398, %v1116, 0
    %v1128 = vsel %vm398, %v1117, 0
    %1130 = vmatprep.subr.bf16.mxu0 0
    %1131 = vmatpush1.bf16.xpose.msra.mxu0 %v1128
    %1132 = vmatprep.subr.bf16.mxu0 0
    %1133 = vmatpush1.bf16.xpose.msra.mxu0 0
    %1134 = vmatprep.subr.bf16.mxu0 0
    %1135 = vmatpush1.bf16.xpose.msra.mxu0 0
    %1136 = vmatprep.subr.bf16.mxu0 0
    %1137 = vmatpush1.bf16.xpose.msra.mxu0 0
    %1138 = vmatprep.subr.bf16.mxu0 0
    %1139 = vmatpush1.bf16.xpose.msra.mxu0 0
    %1140 = vmatprep.subr.bf16.mxu0 0
    %1141 = vmatpush1.bf16.xpose.msra.mxu0 0
    %1142 = vmatprep.subr.bf16.mxu0 0
    %1143 = vmatpush1.bf16.xpose.msra.mxu0 0
    %1144 = vmatprep.subr.bf16.mxu0 0
    %1145 = vmatpush1.bf16.xpose.msra.mxu0 0
    %1146 = vmatprep.subr.bf16.mxu0 0
    %1147 = vmatpush1.bf16.xpose.msra.mxu0 0
    %1148 = vmatprep.subr.bf16.mxu0 0
    %1149 = vmatpush1.bf16.xpose.msra.mxu0 0
    %1150 = vmatprep.subr.bf16.mxu0 0
    %1151 = vmatpush1.bf16.xpose.msra.mxu0 0
    %1152 = vmatprep.subr.bf16.mxu0 0
    %1153 = vmatpush1.bf16.xpose.msra.mxu0 0
    %1154 = vmatprep.subr.bf16.mxu0 0
    %1155 = vmatpush1.bf16.xpose.msra.mxu0 0
    %1156 = vmatprep.subr.bf16.mxu0 0
    %1157 = vmatpush1.bf16.xpose.msra.mxu0 0
    %1158 = vmatprep.subr.bf16.mxu0 0
    %1159 = vmatpush1.bf16.xpose.msra.mxu0 0
    %1160 = vmatprep.subr.bf16.mxu0 0
    %1161 = vmatpush1.bf16.xpose.msra.mxu0 0
    %1162 = vmatprep.mubr.bf16.mxu0 0
    %1163 = vmatmul.mubr.bf16.gmra.mrb[0].mxu0 %v1125
    %v1164 = vpop.f32.mrb[0].mxu0
    %v1165 = vadd.f32 %v1122, %v1164
    %v1166 = vpop.f32.mrb[0].mxu0
    %v1167 = vpop.f32.mrb[0].mxu0
    %v1168 = vpop.f32.mrb[0].mxu0
    %1169 = vdwg.mxu0
    %vm1170 = vcmask 122880
    %1171 = vst.msk [vmem:[%s8] sm:$0x1] %vm1170, %v1165
    %v1172 = vmul.f32 %v1165, 1.442695
    %v1173 = vpow.pop %v1172
    %vm1174 = vcmask 123905
    %1175 = vst.msk [vmem:[%s8] sm:$0x2] %vm1174, %v1173
    // Predicated region
    $region38: #{decoder_forward.1} parent=1 // pred_check
      _
    $region39: #{decoder_forward.1} parent=1 // pred_check_branch
      %1177 = sbr.rel (0) target = $region41
    $region40: #{decoder_forward.1} parent=1 // pred_region
      _
    $region41: #{decoder_forward.1} parent=1 // pred_fallthru
      _
    // Predicated region
    $region42: #{decoder_forward.1} parent=1 // pred_check
      _
    $region43: #{decoder_forward.1} parent=1 // pred_check_branch
      %1179 = sbr.rel (0) target = $region45
    $region44: #{decoder_forward.1} parent=1 // pred_region
      _
    $region45: #{decoder_forward.1} parent=1 // pred_fallthru
      _
    %1180 = vsyncpa [#allocation3], 1

</llo_original>
